<compile_context>
chip_gen: v5e
topology: v5e:2x2
jax: 0.10.0
libtpu: 0.0.40
codegen_flags: <defaults>
</compile_context>

<pallas_src>
import functools
import math

import jax
import jax.numpy as jnp
from jax.experimental import pallas as pl
from jax.experimental.pallas import tpu as pltpu

# ----------------------- small, TPU-aligned synthetic config -----------------------
HIDDEN = 256
NUM_HEADS = 2
NUM_KV_HEADS = 1            # GQA: 2 query heads share 1 KV head
HEAD_DIM = 128
GROUP = NUM_HEADS // NUM_KV_HEADS
INTERMEDIATE = 256
VOCAB = 128
NUM_LAYERS = 4              # config.num_hidden_layers
NUM_KV_LAYERS = 2           # config.num_key_value_layers (SwiftKV prefill layers)
RMS_EPS = 1e-6
ROPE_BASE = 10000.0

Q_SIZE = NUM_HEADS * HEAD_DIM
KV_SIZE = NUM_KV_HEADS * HEAD_DIM
QKV_SIZE = Q_SIZE + 2 * KV_SIZE

ACT_DTYPE = jnp.bfloat16
PARAM_DTYPE = jnp.bfloat16
NEG_INF = -1e30                      # finite f32 mask value (no -inf arithmetic)


def _vmem_limit_bytes():
    """Generation-dependent VMEM budget: ~3/4 of physical, capped, with a safe fallback."""
    cap = 64 * 1024 * 1024           # v7x-safe default
    try:
        info = pltpu.get_tpu_info()
        cap = int(getattr(info, "vmem_capacity_bytes", cap) or cap)
    except Exception:
        pass
    return min(cap * 3 // 4, 100 * 1024 * 1024)


VMEM_LIMIT = _vmem_limit_bytes()


def _round_up(x, m):
    return (x + m - 1) // m * m


def _pick_tile(dim, pref, align):
    """Largest tile <= pref that divides dim and is a multiple of align (else dim itself)."""
    if dim <= pref:
        return dim
    t = (pref // align) * align
    while t >= align:
        if dim % t == 0:
            return t
        t -= align
    return dim


# ------------------- fused (residual-add +) RMSNorm + projection ---------------------
# Used for input_layernorm + qkv_proj and for norm_swiftkv + batched rest-layer KV proj.
# NOTE: the xn_sc prologue cache relies on the j (output-column) axis being "arbitrary"
# (sequential) -- do not promote it to "parallel".

def _norm_matmul_kernel(*refs, has_residual):
    if has_residual:
        x_ref, r_ref, nw_ref, w_ref, o_ref, res_ref, xn_sc = refs
    else:
        x_ref, nw_ref, w_ref, o_ref, res_ref, xn_sc = refs
        r_ref = None

    @pl.when(pl.program_id(1) == 0)
    def _():
        s = x_ref[...].astype(jnp.float32)
        if has_residual:
            s = s + r_ref[...].astype(jnp.float32)
        res_ref[...] = s.astype(res_ref.dtype)
        var = jnp.mean(s * s, axis=-1, keepdims=True)
        xn = s * jax.lax.rsqrt(var + RMS_EPS) * nw_ref[...].astype(jnp.float32)
        xn_sc[...] = xn.astype(xn_sc.dtype)

    o_ref[...] = jnp.dot(xn_sc[...], w_ref[...],
                         preferred_element_type=jnp.float32).astype(o_ref.dtype)


def fused_norm_matmul(x, residual, norm_w, w, *, tm=256, tn=256):
    m, k = x.shape
    k2, n = w.shape
    assert k == k2
    tm = _pick_tile(m, tm, 128)
    tn = _pick_tile(n, tn, 128)
    grid = (m // tm, n // tn)
    has_res = residual is not None

    row_spec = pl.BlockSpec((tm, k), lambda i, j: (i, 0))
    in_arrays = [x] + ([residual] if has_res else []) + [norm_w, w]
    in_specs = ([row_spec] + ([row_spec] if has_res else []) +
                [pl.BlockSpec((1, k), lambda i, j: (0, 0)),
                 pl.BlockSpec((k, tn), lambda i, j: (0, j))])

    return pl.pallas_call(
        functools.partial(_norm_matmul_kernel, has_residual=has_res),
        out_shape=(jax.ShapeDtypeStruct((m, n), x.dtype),
                   jax.ShapeDtypeStruct((m, k), x.dtype)),
        grid_spec=pltpu.PrefetchScalarGridSpec(
            num_scalar_prefetch=0,
            grid=grid,
            in_specs=in_specs,
            out_specs=(pl.BlockSpec((tm, tn), lambda i, j: (i, j)),
                       pl.BlockSpec((tm, k), lambda i, j: (i, 0))),
            scratch_shapes=[pltpu.VMEM((tm, k), x.dtype)]),
        compiler_params=pltpu.CompilerParams(
            dimension_semantics=("parallel", "arbitrary"),
            vmem_limit_bytes=VMEM_LIMIT),
    )(*in_arrays)


# ------------ fused o_proj + residual-add + RMSNorm + SiLU-gated MLP -----------------
# Replaces the standalone o_proj matmul: at j==0 compute attn @ o_w + residual, cache the
# normalized activations in VMEM, then reduce the MLP over the intermediate axis.
# (At production Llama dims drop tm to 128 on v7x so the o_w block + weight streams fit.)

def _oproj_norm_mlp_kernel(attn_ref, r_ref, ow_ref, nw_ref, gw_ref, uw_ref, dw_ref,
                           o_ref, res_ref, xn_sc, acc_sc):
    j = pl.program_id(1)

    @pl.when(j == 0)
    def _():
        s = jnp.dot(attn_ref[...], ow_ref[...], preferred_element_type=jnp.float32)
        s = s + r_ref[...].astype(jnp.float32)
        res_ref[...] = s.astype(res_ref.dtype)
        var = jnp.mean(s * s, axis=-1, keepdims=True)
        xn = s * jax.lax.rsqrt(var + RMS_EPS) * nw_ref[...].astype(jnp.float32)
        xn_sc[...] = xn.astype(xn_sc.dtype)
        acc_sc[...] = jnp.zeros_like(acc_sc)

    xn = xn_sc[...]
    g = jnp.dot(xn, gw_ref[...], preferred_element_type=jnp.float32)
    u = jnp.dot(xn, uw_ref[...], preferred_element_type=jnp.float32)
    a = (g * jax.nn.sigmoid(g) * u).astype(xn.dtype)      # SiLU in f32, bf16 into the MXU
    acc_sc[...] += jnp.dot(a, dw_ref[...], preferred_element_type=jnp.float32)

    @pl.when(j == pl.num_programs(1) - 1)
    def _():
        o_ref[...] = acc_sc[...].astype(o_ref.dtype)


def fused_oproj_norm_mlp(attn, residual, o_w, norm_w, gate_w, up_w, down_w,
                         *, tm=256, ti=512):
    m, qn = attn.shape
    qn2, k = o_w.shape
    k2, inter = gate_w.shape
    assert qn == qn2 and k == k2 and up_w.shape == (k, inter) and down_w.shape == (inter, k)
    tm = _pick_tile(m, tm, 128)
    ti = _pick_tile(inter, ti, 128)
    grid = (m // tm, inter // ti)
    row_k = pl.BlockSpec((tm, k), lambda i, j: (i, 0))

    return pl.pallas_call(
        _oproj_norm_mlp_kernel,
        out_shape=(jax.ShapeDtypeStruct((m, k), attn.dtype),
                   jax.ShapeDtypeStruct((m, k), attn.dtype)),
        grid_spec=pltpu.PrefetchScalarGridSpec(
            num_scalar_prefetch=0,
            grid=grid,
            in_specs=[pl.BlockSpec((tm, qn), lambda i, j: (i, 0)),
                      row_k,
                      pl.BlockSpec((qn, k), lambda i, j: (0, 0)),
                      pl.BlockSpec((1, k), lambda i, j: (0, 0)),
                      pl.BlockSpec((k, ti), lambda i, j: (0, j)),
                      pl.BlockSpec((k, ti), lambda i, j: (0, j)),
                      pl.BlockSpec((ti, k), lambda i, j: (j, 0))],
            out_specs=(row_k, row_k),
            scratch_shapes=[pltpu.VMEM((tm, k), attn.dtype),
                            pltpu.VMEM((tm, k), jnp.float32)]),
        compiler_params=pltpu.CompilerParams(
            dimension_semantics=("parallel", "arbitrary"),
            vmem_limit_bytes=VMEM_LIMIT),
    )(attn, residual, o_w, norm_w, gate_w, up_w, down_w)


# ----------------- lane-dense neox RoPE (all heads in one wide block) ----------------
# rotate_half done with a static slice + concat (no pltpu.roll -> no axis issues),
# optional folding of the 1/sqrt(head_dim) softmax scale into the query heads.

def _rope_kernel(x_ref, c_ref, s_ref, o_ref, *, n_heads, q_heads_scaled):
    c = c_ref[...]                       # (tm, D)  [cos, cos]
    s = s_ref[...]                       # (tm, D)  [-sin, sin]
    d = HEAD_DIM
    half = d // 2
    scale = 1.0 / math.sqrt(d)
    for h in range(n_heads):             # static unroll over heads
        xh = x_ref[:, h * d:(h + 1) * d].astype(jnp.float32)
        swapped = jnp.concatenate([xh[:, half:], xh[:, :half]], axis=-1)   # [x2, x1]
        out = xh * c + swapped * s
        if h < q_heads_scaled:
            out = out * scale
        o_ref[:, h * d:(h + 1) * d] = out.astype(o_ref.dtype)


def apply_rope(x, cos, sin, *, n_rot_heads, q_heads_scaled=0, tm=256):
    m = x.shape[0]
    w = n_rot_heads * HEAD_DIM
    assert x.shape[1] >= w and w % 128 == 0
    tm = _pick_tile(m, tm, 128)
    grid = (m // tm,)
    return pl.pallas_call(
        functools.partial(_rope_kernel, n_heads=n_rot_heads,
                          q_heads_scaled=q_heads_scaled),
        out_shape=jax.ShapeDtypeStruct((m, w), x.dtype),
        grid_spec=pltpu.PrefetchScalarGridSpec(
            num_scalar_prefetch=0,
            grid=grid,
            in_specs=[pl.BlockSpec((tm, w), lambda i: (i, 0)),
                      pl.BlockSpec((tm, HEAD_DIM), lambda i: (i, 0)),
                      pl.BlockSpec((tm, HEAD_DIM), lambda i: (i, 0))],
            out_specs=pl.BlockSpec((tm, w), lambda i: (i, 0))),
        compiler_params=pltpu.CompilerParams(
            dimension_semantics=("parallel",),
            vmem_limit_bytes=VMEM_LIMIT),
    )(x, cos, sin)


# -------- flash attention: pre-rotated Q/K, GQA K/V sharing, causal DMA skipping -----

def _flash_kernel(q_ref, k_ref, v_ref, o_ref, m_sc, l_sc, acc_sc):
    qi = pl.program_id(0)
    ki = pl.program_id(2)
    d = HEAD_DIM

    @pl.when(ki == 0)
    def _():
        m_sc[...] = jnp.full_like(m_sc, NEG_INF)
        l_sc[...] = jnp.zeros_like(l_sc)
        acc_sc[...] = jnp.zeros_like(acc_sc)

    def update(masked):
        k = k_ref[...]
        v = v_ref[...]
        for h in range(GROUP):                      # GROUP query heads share this K/V tile
            q_h = q_ref[:, h * d:(h + 1) * d]
            s = jax.lax.dot_general(q_h, k, (((1,), (1,)), ((), ())),
                                    preferred_element_type=jnp.float32)   # (tq, tkv)
            if masked:                              # only the diagonal block needs the mask
                row = jax.lax.broadcasted_iota(jnp.int32, s.shape, 0)
                col = jax.lax.broadcasted_iota(jnp.int32, s.shape, 1)
                s = jnp.where(col <= row, s, NEG_INF)
            m_prev = m_sc[h]
            m_new = jnp.maximum(m_prev, jnp.max(s, axis=-1, keepdims=True))
            alpha = jnp.exp(m_prev - m_new)
            p = jnp.exp(s - m_new)
            l_sc[h] = alpha * l_sc[h] + jnp.sum(p, axis=-1, keepdims=True)
            acc_sc[h] = alpha * acc_sc[h] + jax.lax.dot_general(
                p.astype(v.dtype), v, (((1,), (0,)), ((), ())),
                preferred_element_type=jnp.float32)
            m_sc[h] = m_new

    # fully-unmasked fast path for blocks strictly below the diagonal
    @pl.when(ki < qi)
    def _():
        update(masked=False)

    # diagonal block: apply the causal mask (local indices; offsets cancel since tq == tkv)
    @pl.when(ki == qi)
    def _():
        update(masked=True)

    @pl.when(ki == pl.num_programs(2) - 1)
    def _():
        for h in range(GROUP):
            o_ref[:, h * d:(h + 1) * d] = (acc_sc[h] * (1.0 / l_sc[h])).astype(o_ref.dtype)


def flash_attention(qk_rot, qkv, *, tq=128):
    """qk_rot: [T, Q_SIZE + KV_SIZE] pre-rotated (Q already scaled); qkv: [T, QKV_SIZE]
    (V read from its columns).  Returns [T, Q_SIZE]."""
    m = qkv.shape[0]
    assert qkv.shape[1] == QKV_SIZE and qk_rot.shape == (m, Q_SIZE + KV_SIZE)
    d = HEAD_DIM
    tq = _pick_tile(m, tq, 128)
    tkv = tq                                   # keep ki<=qi causal math exact
    grid = (m // tq, NUM_KV_HEADS, m // tkv)   # (qi, kv-head g, ki); qi leads for megacore

    # Clamp ki above the diagonal so the block index repeats and the pipeline skips the DMA.
    q_spec = pl.BlockSpec((tq, GROUP * d), lambda qi, g, ki: (qi, g))
    k_spec = pl.BlockSpec((tkv, d),
                          lambda qi, g, ki: (jnp.minimum(ki, qi), NUM_HEADS + g))
    v_spec = pl.BlockSpec((tkv, d),
                          lambda qi, g, ki: (jnp.minimum(ki, qi),
                                             NUM_HEADS + NUM_KV_HEADS + g))

    return pl.pallas_call(
        _flash_kernel,
        out_shape=jax.ShapeDtypeStruct((m, Q_SIZE), qkv.dtype),
        grid_spec=pltpu.PrefetchScalarGridSpec(
            num_scalar_prefetch=0,
            grid=grid,
            in_specs=[q_spec, k_spec, v_spec],
            out_specs=pl.BlockSpec((tq, GROUP * d), lambda qi, g, ki: (qi, g)),
            scratch_shapes=[pltpu.VMEM((GROUP, tq, 1), jnp.float32),
                            pltpu.VMEM((GROUP, tq, 1), jnp.float32),
                            pltpu.VMEM((GROUP, tq, d), jnp.float32)]),
        compiler_params=pltpu.CompilerParams(
            dimension_semantics=("parallel", "parallel", "arbitrary"),
            vmem_limit_bytes=VMEM_LIMIT),
    )(qk_rot, qk_rot, qkv)


# ----------------------------------- JAX glue ---------------------------------------

def rope_tables(positions):
    """Full-width tables for rotate-half RoPE: cos_cat=[c,c], sin_signed=[-s,s]."""
    inv_freq = 1.0 / (ROPE_BASE ** (
        jnp.arange(0, HEAD_DIM, 2, dtype=jnp.float32) / HEAD_DIM))
    freqs = positions.astype(jnp.float32)[:, None] * inv_freq[None, :]   # (T, D/2)
    cos = jnp.cos(freqs)
    sin = jnp.sin(freqs)
    return (jnp.concatenate([cos, cos], axis=-1),
            jnp.concatenate([-sin, sin], axis=-1))


def init_params(key):
    def nrm(k, shape, scale=0.02):
        return (scale * jax.random.normal(k, shape, jnp.float32)).astype(PARAM_DTYPE)

    def ln_w(k):
        return (1.0 + 0.05 * jax.random.normal(k, (1, HIDDEN), jnp.float32)
                ).astype(PARAM_DTYPE)

    keys = iter(jax.random.split(key, 64))
    params = {"embed": nrm(next(keys), (VOCAB, HIDDEN))}

    prefill_layers = []
    for _ in range(NUM_KV_LAYERS):
        prefill_layers.append({
            "input_ln": ln_w(next(keys)),
            "qkv_w": nrm(next(keys), (HIDDEN, QKV_SIZE)),
            "o_w": nrm(next(keys), (Q_SIZE, HIDDEN)),
            "post_ln": ln_w(next(keys)),
            "gate_w": nrm(next(keys), (HIDDEN, INTERMEDIATE)),
            "up_w": nrm(next(keys), (HIDDEN, INTERMEDIATE)),
            "down_w": nrm(next(keys), (INTERMEDIATE, HIDDEN)),
        })
    params["prefill_layers"] = prefill_layers
    params["norm_swiftkv"] = ln_w(next(keys))

    # SwiftKV rest-layer kv_proj weights stacked into one wide matmul:
    # columns = [k_w(L0) | k_w(L1) | ... | v_w(L0) | v_w(L1) | ...]
    rest_names, k_ws, v_ws = [], [], []
    for i in range(NUM_KV_LAYERS, NUM_LAYERS):
        rest_names.append(f"model.layers.{i}.self_attn.attn")
        k_ws.append(nrm(next(keys), (HIDDEN, KV_SIZE)))
        v_ws.append(nrm(next(keys), (HIDDEN, KV_SIZE)))
    params["rest_kv_w"] = jnp.concatenate(k_ws + v_ws, axis=1)
    return params, rest_names


def prefill_runner_forward(params, rest_names, input_ids, positions):
    t = input_ids.shape[0]
    hidden = jnp.take(params["embed"], input_ids, axis=0).astype(ACT_DTYPE)

    # pad the token axis to a multiple of 128: every row tile is 128-aligned, tq==tkv==128.
    # padded rows reuse position 0 and are provably inert (causal mask + final [:t] slice).
    tp = max(_round_up(t, 128), 128)
    pad = tp - t
    if pad:
        hidden = jnp.pad(hidden, ((0, pad), (0, 0)))
        positions = jnp.pad(positions, (0, pad))
    cos, sin = rope_tables(positions)

    residual = None                   # first layer skips the zero-residual DMA + add
    # ---- prefill decoder layers (layers[:num_key_value_layers]) ----
    for lyr in params["prefill_layers"]:
        qkv, residual = fused_norm_matmul(hidden, residual, lyr["input_ln"], lyr["qkv_w"])
        # RoPE hoisted out of the attention kv loop; softmax scale folded into Q.
        qk_rot = apply_rope(qkv, cos, sin,
                            n_rot_heads=NUM_HEADS + NUM_KV_HEADS,
                            q_heads_scaled=NUM_HEADS)
        attn = flash_attention(qk_rot, qkv)
        hidden, residual = fused_oproj_norm_mlp(
            attn, residual, lyr["o_w"], lyr["post_ln"],
            lyr["gate_w"], lyr["up_w"], lyr["down_w"])

    # ---- SwiftKV: norm_swiftkv(hidden+residual) fused with batched rest-layer KV proj ----
    kv_all, _ = fused_norm_matmul(hidden, residual, params["norm_swiftkv"],
                                  params["rest_kv_w"])
    n_rest = len(rest_names)
    keys_all = apply_rope(kv_all, cos, sin, n_rot_heads=n_rest * NUM_KV_HEADS)
    vals_all = kv_all[:, n_rest * KV_SIZE:]

    rest_keys, rest_values = {}, {}
    for idx, name in enumerate(rest_names):
        rest_keys[name] = keys_all[:t, idx * KV_SIZE:(idx + 1) * KV_SIZE]
        rest_values[name] = vals_all[:t, idx * KV_SIZE:(idx + 1) * KV_SIZE]

    # TODO(synk): vLLM's paged KV-cache writes / Attention cache bookkeeping are runtime
    # plumbing with no Pallas equivalent here; only the prefill math is reproduced.
    return hidden[:t], residual[:t], rest_keys, rest_values


# ------------------------- pure-JAX f32 reference for checking -----------------------

def reference_forward(params, rest_names, input_ids, positions):
    f32 = jnp.float32
    t = input_ids.shape[0]
    hidden = params["embed"].astype(f32)[input_ids]
    residual = jnp.zeros_like(hidden)

    inv_freq = 1.0 / (ROPE_BASE ** (jnp.arange(0, HEAD_DIM, 2, dtype=f32) / HEAD_DIM))
    freqs = positions.astype(f32)[:, None] * inv_freq[None, :]
    cos, sin = jnp.cos(freqs), jnp.sin(freqs)

    def rms(x, w):
        var = jnp.mean(x * x, axis=-1, keepdims=True)
        return x * jax.lax.rsqrt(var + RMS_EPS) * w.astype(f32)

    def rope(x):
        nh = x.shape[-1] // HEAD_DIM
        xh = x.reshape(t, nh, HEAD_DIM)
        x1, x2 = xh[..., :HEAD_DIM // 2], xh[..., HEAD_DIM // 2:]
        c, s = cos[:, None, :], sin[:, None, :]
        out = jnp.concatenate([x1 * c - x2 * s, x2 * c + x1 * s], axis=-1)
        return out.reshape(t, nh * HEAD_DIM)

    mask = jnp.tril(jnp.ones((t, t), dtype=bool))
    for lyr in params["prefill_layers"]:
        res_new = hidden + residual
        hn = rms(res_new, lyr["input_ln"])
        qkv = hn @ lyr["qkv_w"].astype(f32)
        q = rope(qkv[:, :Q_SIZE])
        k = rope(qkv[:, Q_SIZE:Q_SIZE + KV_SIZE])
        v = qkv[:, Q_SIZE + KV_SIZE:]
        qh = q.reshape(t, NUM_HEADS, HEAD_DIM).transpose(1, 0, 2)
        kh = jnp.repeat(k.reshape(t, NUM_KV_HEADS, HEAD_DIM).transpose(1, 0, 2), GROUP, 0)
        vh = jnp.repeat(v.reshape(t, NUM_KV_HEADS, HEAD_DIM).transpose(1, 0, 2), GROUP, 0)
        s = jnp.einsum("hqd,hkd->hqk", qh, kh) / math.sqrt(HEAD_DIM)
        s = jnp.where(mask[None], s, NEG_INF)
        p = jax.nn.softmax(s, axis=-1)
        attn = jnp.einsum("hqk,hkd->hqd", p, vh).transpose(1, 0, 2).reshape(t, Q_SIZE)
        attn_out = attn @ lyr["o_w"].astype(f32)
        residual = attn_out + res_new
        hn2 = rms(residual, lyr["post_ln"])
        g = hn2 @ lyr["gate_w"].astype(f32)
        u = hn2 @ lyr["up_w"].astype(f32)
        hidden = (g * jax.nn.sigmoid(g) * u) @ lyr["down_w"].astype(f32)

    sh = rms(hidden + residual, params["norm_swiftkv"])
    kv_all = sh @ params["rest_kv_w"].astype(f32)
    n_rest = len(rest_names)
    keys_all = rope(kv_all[:, :n_rest * KV_SIZE])
    vals_all = kv_all[:, n_rest * KV_SIZE:]
    rest_k = {nm: keys_all[:, i * KV_SIZE:(i + 1) * KV_SIZE] for i, nm in enumerate(rest_names)}
    rest_v = {nm: vals_all[:, i * KV_SIZE:(i + 1) * KV_SIZE] for i, nm in enumerate(rest_names)}
    return hidden, residual, rest_k, rest_v


if __name__ == "__main__":
    key = jax.random.PRNGKey(0)
    pkey, ikey = jax.random.split(key)
    params, rest_names = init_params(pkey)

    T = 16
    input_ids = jax.random.randint(ikey, (T,), 0, VOCAB, dtype=jnp.int32)
    positions = jnp.arange(T, dtype=jnp.int32)

    out = prefill_runner_forward(params, rest_names, input_ids, positions)
    jax.block_until_ready(out)
    hidden, residual, rest_keys, rest_values = out

    assert hidden.shape == (T, HIDDEN) and residual.shape == (T, HIDDEN)
    for name in rest_names:
        assert rest_keys[name].shape == (T, KV_SIZE)
        assert rest_values[name].shape == (T, KV_SIZE)

    # loose numerical check (bf16 kernels vs pure-JAX f32 reference)
    r_hidden, r_residual, r_keys, r_vals = reference_forward(
        params, rest_names, input_ids, positions)

    def check(name, got, want):
        got = jnp.asarray(got, jnp.float32)
        want = jnp.asarray(want, jnp.float32)
        err = float(jnp.max(jnp.abs(got - want)))
        bound = 5e-2 + 5e-2 * float(jnp.max(jnp.abs(want)))
        assert err <= bound, f"{name}: max abs err {err} > {bound}"

    check("hidden", hidden, r_hidden)
    check("residual", residual, r_residual)
    for name in rest_names:
        check(f"keys[{name}]", rest_keys[name], r_keys[name])
        check(f"values[{name}]", rest_values[name], r_vals[name])

    print("KERNEL_OK")
</pallas_src>

<mosaic_0001>
module attributes {stable_mosaic.version = 11 : i64} {
  func.func @_norm_matmul_kernel(%arg0: i32, %arg1: i32, %arg2: memref<128x256xbf16, #tpu.memory_space<vmem>>, %arg3: memref<1x256xbf16, #tpu.memory_space<vmem>>, %arg4: memref<256x256xbf16, #tpu.memory_space<vmem>>, %arg5: memref<128x256xbf16, #tpu.memory_space<vmem>>, %arg6: memref<128x256xbf16, #tpu.memory_space<vmem>>, %arg7: memref<128x256xbf16, #tpu.memory_space<vmem>>) attributes {dimension_semantics = [#tpu.dimension_semantics<parallel>, #tpu.dimension_semantics<arbitrary>], iteration_bounds = array<i64: 1, 2>, scalar_prefetch = 0 : i64, scratch_operands = 1 : i64, tpu.core_type = #tpu.core_type<tc>, window_params = [{transform_indices = @transform_0, window_bounds = array<i64: 128, 256>}, {pipeline_mode = #tpu.pipeline_mode<synchronous>, transform_indices = @transform_1, window_bounds = array<i64: 1, 256>}, {transform_indices = @transform_2, window_bounds = array<i64: 256, 256>}, {transform_indices = @transform_3, window_bounds = array<i64: 128, 256>}, {transform_indices = @transform_4, window_bounds = array<i64: 128, 256>}]} {
    %c0_i32 = arith.constant 0 : i32
    %0 = arith.cmpi eq, %arg1, %c0_i32 : i32
    %1 = arith.extui %0 : i1 to i32
    %c0_i32_0 = arith.constant 0 : i32
    %2 = arith.cmpi ne, %1, %c0_i32_0 : i32
    scf.if %2 {
      %c0_6 = arith.constant 0 : index
      %c0_7 = arith.constant 0 : index
      %8 = vector.load %arg2[%c0_6, %c0_7] : memref<128x256xbf16, #tpu.memory_space<vmem>>, vector<128x256xbf16>
      %9 = arith.extf %8 : vector<128x256xbf16> to vector<128x256xf32>
      %10 = arith.truncf %9 : vector<128x256xf32> to vector<128x256xbf16>
      %c0_8 = arith.constant 0 : index
      %c0_9 = arith.constant 0 : index
      %11 = vector.load %arg6[%c0_8, %c0_9] : memref<128x256xbf16, #tpu.memory_space<vmem>>, vector<128x256xbf16>
      tpu.vector_store %arg6[%c0_8, %c0_9], %10 {strides = array<i32>} : memref<128x256xbf16, #tpu.memory_space<vmem>>, vector<128x256xbf16>,
      %12 = arith.mulf %9, %9 : vector<128x256xf32>
      %cst_10 = arith.constant dense<0.000000e+00> : vector<128xf32>
      %13 = vector.multi_reduction <add>, %12, %cst_10 [1] : vector<128x256xf32> to vector<128xf32>
      %14 = vector.shape_cast %13 : vector<128xf32> to vector<128x1xf32>
      %cst_11 = arith.constant 2.560000e+02 : f32
      %15 = vector.broadcast %cst_11 : f32 to vector<128x1xf32>
      %16 = arith.divf %14, %15 : vector<128x1xf32>
      %cst_12 = arith.constant 9.99999997E-7 : f32
      %17 = vector.broadcast %cst_12 : f32 to vector<128x1xf32>
      %18 = arith.addf %16, %17 : vector<128x1xf32>
      %19 = math.rsqrt %18 : vector<128x1xf32>
      %20 = vector.broadcast %19 : vector<128x1xf32> to vector<128x256xf32>
      %21 = arith.mulf %9, %20 : vector<128x256xf32>
      %c0_13 = arith.constant 0 : index
      %c0_14 = arith.constant 0 : index
      %22 = vector.load %arg3[%c0_13, %c0_14] : memref<1x256xbf16, #tpu.memory_space<vmem>>, vector<1x256xbf16>
      %23 = arith.extf %22 : vector<1x256xbf16> to vector<1x256xf32>
      %24 = vector.broadcast %23 : vector<1x256xf32> to vector<128x256xf32>
      %25 = arith.mulf %21, %24 : vector<128x256xf32>
      %26 = arith.truncf %25 : vector<128x256xf32> to vector<128x256xbf16>
      %c0_15 = arith.constant 0 : index
      %c0_16 = arith.constant 0 : index
      %27 = vector.load %arg7[%c0_15, %c0_16] : memref<128x256xbf16, #tpu.memory_space<vmem>>, vector<128x256xbf16>
      tpu.vector_store %arg7[%c0_15, %c0_16], %26 {strides = array<i32>} : memref<128x256xbf16, #tpu.memory_space<vmem>>, vector<128x256xbf16>,
    } else {
    }
    %c0 = arith.constant 0 : index
    %c0_1 = arith.constant 0 : index
    %3 = vector.load %arg7[%c0, %c0_1] : memref<128x256xbf16, #tpu.memory_space<vmem>>, vector<128x256xbf16>
    %c0_2 = arith.constant 0 : index
    %c0_3 = arith.constant 0 : index
    %4 = vector.load %arg4[%c0_2, %c0_3] : memref<256x256xbf16, #tpu.memory_space<vmem>>, vector<256x256xbf16>
    %cst = arith.constant dense<0.000000e+00> : vector<128x256xf32>
    %5 = tpu.matmul %3, %4, %cst {dimension_numbers = #tpu.dot_dimension_numbers<[1], [0], [0], [1], [0, 0, 1, 1], [], []>} : vector<128x256xbf16>, vector<256x256xbf16>, vector<128x256xf32> -> vector<128x256xf32>
    %6 = arith.truncf %5 : vector<128x256xf32> to vector<128x256xbf16>
    %c0_4 = arith.constant 0 : index
    %c0_5 = arith.constant 0 : index
    %7 = vector.load %arg5[%c0_4, %c0_5] : memref<128x256xbf16, #tpu.memory_space<vmem>>, vector<128x256xbf16>
    tpu.vector_store %arg5[%c0_4, %c0_5], %6 {strides = array<i32>} : memref<128x256xbf16, #tpu.memory_space<vmem>>, vector<128x256xbf16>,
    return
  }
  func.func @transform_0(%arg0: i32, %arg1: i32) -> (i32, i32) {
    %c0_i32 = arith.constant 0 : i32
    %c0_i32_0 = arith.constant 0 : i32
    return %arg0, %c0_i32 : i32, i32
  }
  func.func @transform_1(%arg0: i32, %arg1: i32) -> (i32, i32) {
    %c0_i32 = arith.constant 0 : i32
    %c0_i32_0 = arith.constant 0 : i32
    %c0_i32_1 = arith.constant 0 : i32
    return %c0_i32, %c0_i32_0 : i32, i32
  }
  func.func @transform_2(%arg0: i32, %arg1: i32) -> (i32, i32) {
    %c0_i32 = arith.constant 0 : i32
    %c0_i32_0 = arith.constant 0 : i32
    return %c0_i32, %arg1 : i32, i32
  }
  func.func @transform_3(%arg0: i32, %arg1: i32) -> (i32, i32) {
    %c0_i32 = arith.constant 0 : i32
    return %arg0, %arg1 : i32, i32
  }
  func.func @transform_4(%arg0: i32, %arg1: i32) -> (i32, i32) {
    %c0_i32 = arith.constant 0 : i32
    %c0_i32_0 = arith.constant 0 : i32
    return %arg0, %c0_i32 : i32, i32
  }
}

</mosaic_0001>

<llo_original>
// kernel: tpu_custom_call.1
$region0: #{tpu_custom_call.1}
  #allocation0 [shape = 'u32[]', space=smem, size = 0x4, offset = 0x4, fixed_abs, tag = 'smem constant byte address 0x4 - core index']
  #allocation1 [shape = 'u32[72,128]{1,0:T(1,128)}', space=vmem, size = 0x9000, scoped, tag = 'internal scratch']
  #allocation2 [shape = 'bf16[128,256]{1,0:T(8,128)(2,1)}', space=vmem, size = 0x10000, scoped, tag = 'scratch operand']
  %s0 = inlined_call_operand.hbm [shape: bf16[128,256], index: 0, kind: input, shape index: {}]
  %s1 = inlined_call_operand.hbm [shape: bf16[1,256], index: 1, kind: input, shape index: {}]
  %s2 = inlined_call_operand.hbm [shape: bf16[256,512], index: 2, kind: input, shape index: {}]
  %s3 = inlined_call_operand.hbm [shape: bf16[128,512], index: 3, kind: output, shape index: {0}]
  %s4 = inlined_call_operand.hbm [shape: bf16[128,256], index: 4, kind: output, shape index: {1}]
  %5 = xla_tuple %s3, %s4
  %s6 = sld [smem:[#allocation0]]
  $region69: #{tpu_custom_call.1} parent=0
    _
  %s8 = ssub.s32 1, %s6
  %s9 = scalar_select 0, %s8, %s6
  $region1: #{tpu_custom_call.1} parent=0
    #allocation3 [shape = 'u8[65536]{0}', space=vmem, size = 0x10000, scoped, tag = 'input window, operand 0, single buffered']
    #allocation4 [shape = 's32[2]{0}', space=sflag, size = 0x8, scoped, tag = 'scoped memory for tpu_custom_call.1']
    #allocation5 [shape = 's32[2]{0}', space=sflag, size = 0x8, scoped, tag = 'scoped memory for tpu_custom_call.1']
    #allocation6 [shape = 'u8[1024]{0}', space=vmem, size = 0x400, scoped, tag = 'input window, operand 1, single buffered']
    #allocation7 [shape = 's32[1]{0}', space=sflag, size = 0x4, scoped, tag = 'scoped memory for tpu_custom_call.1']
    #allocation8 [shape = 'u8[262144]{0}', space=vmem, size = 0x40000, scoped, tag = 'input window, operand 2']
    #allocation9 [shape = 'u8[131072]{0}', space=vmem, size = 0x20000, scoped, tag = 'output window, operand 0']
    #allocation10 [shape = 'u8[65536]{0}', space=vmem, size = 0x10000, scoped, tag = 'output window, operand 1, single buffered']
    #allocation11 [shape = 's32[1]{0}', space=sflag, size = 0x4, scoped, tag = 'scoped memory for tpu_custom_call.1']
    %10 = vsyncpa [#allocation4], 0
    %11 = vsyncpa [#allocation7], 0
    %12 = vsyncpa [#allocation5], 0
    %s13 = scalar_lea.sflag [#allocation5], 1
    %14 = vsyncpa %s13, 0
    %15 = vsyncpa [#allocation11], 0
    loop: start=0, step=1, limit=4
    $region2: #{tpu_custom_call.1} parent=1 // loop_pre_header
      _
    $region3: #{tpu_custom_call.1} parent=1 // loop_header
      %s17 = sphi 0, %s21
      %p18 = scmp.ge.s32.totalorder %s17, 4
      %s24 = sphi 0, %s36
      %s25 = sphi 0, %s32
      %s26 = sphi 0, %s24
      %s27 = sphi 0, %s25
      %s28 = sphi 0, %s26
      %s29 = sphi 0, %s27
      %s39 = sphi 0, %s41
      %s42 = sphi 0, %s39
      %s43 = sphi 0, %s42
      %s59 = sphi 0, %s43
      %s63 = sphi 0, %s63
      %s65 = sphi 0, %s63
      %s66 = sphi 0, %s65
      %s80 = sphi 0, %s66
      %s86 = sphi 0, %s88
      %s89 = sphi 0, %s86
      %s90 = sphi 0, %s89
      %s106 = sphi 0, %s90
      %s114 = sphi 0, %s116
      %s117 = sphi 0, %s114
      %s118 = sphi 0, %s117
      %s134 = sphi 0, %s118
      %s140 = sphi 0, %s142
      %s143 = sphi 0, %s140
      %s144 = sphi 0, %s143
      %s160 = sphi 0, %s144
    $region4: #{tpu_custom_call.1} parent=1 // loop_header_branch
      %20 = sbr.rel (%p18) target = $region8
    $region5: #{tpu_custom_call.1} parent=1 // loop_body
      %s22 = ssub.s32 %s17, 1
      %s23 = ssub.s32 %s17, 2
      %s30 = sadd.s32 1, %s25
      %p31 = scmp.ge.s32.totalorder %s30, 2
      %s32 = scalar_select %p31, 0, %s30
      %s33 = sadd.s32 1, %s24
      %s34 = scalar_select %p31, %s33, %s24
      %p35 = scmp.ge.s32.totalorder %s34, 1
      %s36 = scalar_select %p35, 0, %s34
      %s37 = ssub.s32 %s24, %s36
      %p38 = scmp.eq.s32.totalorder %s37, 0
      %s40 = sadd.s32 %s39, 1
      %s41 = scalar_select %p38, %s39, %s40
      %p44 = pneg %p38
      %p45 = scmp.eq.s32.totalorder %s17, 1
      %p46 = por %p44, %p45
      %p47 = scmp.ne.s32.totalorder %s39, %s42
      %p48 = scmp.eq.s32.totalorder %s17, 0
      %p49 = por %p47, %p48
      %p50 = scmp.ne.s32.totalorder %s39, %s42
      %p51 = scmp.eq.s32.totalorder %s22, 1
      %p52 = por %p50, %p51
      %p53 = scmp.ne.s32.totalorder %s42, %s43
      %p54 = scmp.eq.s32.totalorder %s22, 0
      %p55 = por %p53, %p54
      %p56 = scmp.ne.s32.totalorder %s42, %s43
      %p57 = scmp.eq.s32.totalorder %s23, 1
      %p58 = por %p56, %p57
      %p60 = scmp.ne.s32.totalorder %s43, %s59
      %p61 = scmp.eq.s32.totalorder %s23, 0
      %p62 = por %p60, %p61
      %s64 = sadd.s32 %s63, 1
      %p67 = scmp.eq.s32.totalorder %s17, 1
      %p68 = scmp.ne.s32.totalorder %s63, %s65
      %p69 = scmp.eq.s32.totalorder %s17, 0
      %p70 = por %p68, %p69
      %p71 = scmp.ne.s32.totalorder %s63, %s65
      %p72 = scmp.eq.s32.totalorder %s22, 1
      %p73 = por %p71, %p72
      %p74 = scmp.ne.s32.totalorder %s65, %s66
      %p75 = scmp.eq.s32.totalorder %s22, 0
      %p76 = por %p74, %p75
      %p77 = scmp.ne.s32.totalorder %s65, %s66
      %p78 = scmp.eq.s32.totalorder %s23, 1
      %p79 = por %p77, %p78
      %p81 = scmp.ne.s32.totalorder %s66, %s80
      %p82 = scmp.eq.s32.totalorder %s23, 0
      %p83 = por %p81, %p82
      %s84 = ssub.s32 %s25, %s32
      %p85 = scmp.eq.s32.totalorder %s84, 0
      %s87 = sadd.s32 %s86, 1
      %s88 = scalar_select %p85, %s86, %s87
      %p91 = pneg %p85
      %p92 = scmp.eq.s32.totalorder %s17, 1
      %p93 = por %p91, %p92
      %p94 = scmp.ne.s32.totalorder %s86, %s89
      %p95 = scmp.eq.s32.totalorder %s17, 0
      %p96 = por %p94, %p95
      %p97 = scmp.ne.s32.totalorder %s86, %s89
      %p98 = scmp.eq.s32.totalorder %s22, 1
      %p99 = por %p97, %p98
      %p100 = scmp.ne.s32.totalorder %s89, %s90
      %p101 = scmp.eq.s32.totalorder %s22, 0
      %p102 = por %p100, %p101
      %p103 = scmp.ne.s32.totalorder %s89, %s90
      %p104 = scmp.eq.s32.totalorder %s23, 1
      %p105 = por %p103, %p104
      %p107 = scmp.ne.s32.totalorder %s90, %s106
      %p108 = scmp.eq.s32.totalorder %s23, 0
      %p109 = por %p107, %p108
      %s110 = ssub.s32 %s24, %s36
      %s111 = ssub.s32 %s25, %s32
      %s112 = sor.u32 %s110, %s111
      %p113 = scmp.eq.s32.totalorder %s112, 0
      %s115 = sadd.s32 %s114, 1
      %s116 = scalar_select %p113, %s114, %s115
      %p119 = pneg %p113
      %p120 = scmp.eq.s32.totalorder %s17, 1
      %p121 = por %p119, %p120
      %p122 = scmp.ne.s32.totalorder %s114, %s117
      %p123 = scmp.eq.s32.totalorder %s17, 0
      %p124 = por %p122, %p123
      %p125 = scmp.ne.s32.totalorder %s114, %s117
      %p126 = scmp.eq.s32.totalorder %s22, 1
      %p127 = por %p125, %p126
      %p128 = scmp.ne.s32.totalorder %s117, %s118
      %p129 = scmp.eq.s32.totalorder %s22, 0
      %p130 = por %p128, %p129
      %p131 = scmp.ne.s32.totalorder %s117, %s118
      %p132 = scmp.eq.s32.totalorder %s23, 1
      %p133 = por %p131, %p132
      %p135 = scmp.ne.s32.totalorder %s118, %s134
      %p136 = scmp.eq.s32.totalorder %s23, 0
      %p137 = por %p135, %p136
      %s138 = ssub.s32 %s24, %s36
      %p139 = scmp.eq.s32.totalorder %s138, 0
      %s141 = sadd.s32 %s140, 1
      %s142 = scalar_select %p139, %s140, %s141
      %p145 = pneg %p139
      %p146 = scmp.eq.s32.totalorder %s17, 1
      %p147 = por %p145, %p146
      %p148 = scmp.ne.s32.totalorder %s140, %s143
      %p149 = scmp.eq.s32.totalorder %s17, 0
      %p150 = por %p148, %p149
      %p151 = scmp.ne.s32.totalorder %s140, %s143
      %p152 = scmp.eq.s32.totalorder %s22, 1
      %p153 = por %p151, %p152
      %p154 = scmp.ne.s32.totalorder %s143, %s144
      %p155 = scmp.eq.s32.totalorder %s22, 0
      %p156 = por %p154, %p155
      %p157 = scmp.ne.s32.totalorder %s143, %s144
      %p158 = scmp.eq.s32.totalorder %s23, 1
      %p159 = por %p157, %p158
      %p161 = scmp.ne.s32.totalorder %s144, %s160
      %p162 = scmp.eq.s32.totalorder %s23, 0
      %p163 = por %p161, %p162
      %p164 = scmp.le.s32.totalorder 1, %s17
      %p165 = scmp.lt.s32.totalorder %s17, 3
      %p166 = pnand %p164, %p165
      %p167 = pneg %p166
      // Predicated region
      $region9: #{tpu_custom_call.1} parent=5 // pred_check
        _
      $region10: #{tpu_custom_call.1} parent=5 // pred_check_branch
        %169 = sbr.rel (%p166) target = $region12
      $region11: #{tpu_custom_call.1} parent=5 // pred_region
        %s170 = ssub.s32 %s17, 1
        // Predicated region
        $region13: #{tpu_custom_call.1} parent=11 // pred_check
          %p171 = pneg %p55
        $region14: #{tpu_custom_call.1} parent=11 // pred_check_branch
          %173 = sbr.rel (%p171) target = $region16
        $region15: #{tpu_custom_call.1} parent=11 // pred_region
          %s174 = smul.u32 16, %s26
          %176 = vsyncadd [#allocation4], 0
          %s177 = smul.addr %s174, 2
          %s178 = smul.addr %s177, 4
          %s179 = scalar_lea.hbm %s0, %s178
          %s180 = sshll.u32 %s179, 4
          %s181 = int_to_ptr.hbm [resolvable:$true] %s180
          %s182 = sshll.u32 [#allocation3], 4
          %s183 = int_to_ptr.vmem [resolvable:$true] %s182
          %188 = dma.hbm_to_vmem [thread:$0]  %s181, 2048, %s183, [#allocation4], 128, 128, 8
        $region16: #{tpu_custom_call.1} parent=11 // pred_fallthru
          _
        // Predicated region
        $region17: #{tpu_custom_call.1} parent=11 // pred_check
          %p189 = pneg %p76
        $region18: #{tpu_custom_call.1} parent=11 // pred_check_branch
          %191 = sbr.rel (%p189) target = $region20
        $region19: #{tpu_custom_call.1} parent=11 // pred_region
          %193 = vsyncadd [#allocation7], 0
          %s195 = sshll.u32 %s1, 4
          %s196 = int_to_ptr.hbm [resolvable:$true] %s195
          %s197 = sshll.u32 [#allocation6], 4
          %s198 = int_to_ptr.vmem [resolvable:$true] %s197
          %200 = dma.hbm_to_vmem [thread:$0]  %s196, 32, %s198, [#allocation7]
        $region20: #{tpu_custom_call.1} parent=11 // pred_fallthru
          _
      $region12: #{tpu_custom_call.1} parent=5 // pred_fallthru
        _
      %p201 = scmp.lt.s32.totalorder %s17, 2
      // Predicated region
      $region21: #{tpu_custom_call.1} parent=5 // pred_check
        %p202 = pneg %p201
      $region22: #{tpu_custom_call.1} parent=5 // pred_check_branch
        %204 = sbr.rel (%p202) target = $region24
      $region23: #{tpu_custom_call.1} parent=5 // pred_region
        // Predicated region
        $region25: #{tpu_custom_call.1} parent=23 // pred_check
          %p205 = pneg %p96
        $region26: #{tpu_custom_call.1} parent=23 // pred_check_branch
          %207 = sbr.rel (%p205) target = $region28
        $region27: #{tpu_custom_call.1} parent=23 // pred_region
          %s208 = sand.u32 %s17, 1
          %s209 = scalar_lea.sflag [#allocation4], %s208
          %s210 = sand.u32 %s86, 1
          %s211 = smul.addr %s210, 256
          %s212 = scalar_lea.vmem [#allocation8], %s211
          %s213 = smul.u32 2, %s25
          %215 = vsyncadd %s209, 0
          %s216 = smul.addr %s213, 4
          %s217 = scalar_lea.hbm %s2, %s216
          %s218 = sshll.u32 %s217, 4
          %s219 = int_to_ptr.hbm [resolvable:$true] %s218
          %s220 = sshll.u32 %s212, 4
          %s221 = int_to_ptr.vmem [resolvable:$true] %s220
          %226 = dma.hbm_to_vmem [thread:$0]  %s219, 4096, %s221, %s209, 256, 128, 8
        $region28: #{tpu_custom_call.1} parent=23 // pred_fallthru
          _
      $region24: #{tpu_custom_call.1} parent=5 // pred_fallthru
        _
      %p227 = scmp.le.s32.totalorder 1, %s17
      %p228 = scmp.lt.s32.totalorder %s17, 3
      %p229 = pnand %p227, %p228
      %p230 = pneg %p229
      // Predicated region
      $region29: #{tpu_custom_call.1} parent=5 // pred_check
        _
      $region30: #{tpu_custom_call.1} parent=5 // pred_check_branch
        %232 = sbr.rel (%p229) target = $region32
      $region31: #{tpu_custom_call.1} parent=5 // pred_region
        %s233 = ssub.s32 %s17, 1
        // Predicated region
        $region33: #{tpu_custom_call.1} parent=31 // pred_check
          %p234 = pneg %p55
        $region34: #{tpu_custom_call.1} parent=31 // pred_check_branch
          %236 = sbr.rel (%p234) target = $region36
        $region35: #{tpu_custom_call.1} parent=31 // pred_region
          %238 = dma.done [#allocation4], 2048
        $region36: #{tpu_custom_call.1} parent=31 // pred_fallthru
          _
        // Predicated region
        $region37: #{tpu_custom_call.1} parent=31 // pred_check
          %p239 = pneg %p76
        $region38: #{tpu_custom_call.1} parent=31 // pred_check_branch
          %241 = sbr.rel (%p239) target = $region40
        $region39: #{tpu_custom_call.1} parent=31 // pred_region
          %243 = dma.done [#allocation7], 32
        $region40: #{tpu_custom_call.1} parent=31 // pred_fallthru
          _
        %s244 = sand.u32 %s22, 1
        %s245 = scalar_lea.sflag [#allocation4], %s244
        %s246 = sand.u32 %s89, 1
        %s247 = smul.addr %s246, 256
        %s248 = scalar_lea.vmem [#allocation8], %s247
        // Predicated region
        $region41: #{tpu_custom_call.1} parent=31 // pred_check
          %p249 = pneg %p102
        $region42: #{tpu_custom_call.1} parent=31 // pred_check_branch
          %251 = sbr.rel (%p249) target = $region44
        $region43: #{tpu_custom_call.1} parent=31 // pred_region
          %253 = dma.done %s245, 4096
        $region44: #{tpu_custom_call.1} parent=31 // pred_fallthru
          _
        %p254 = pneg %p55
        %p255 = pneg %p52
        %p256 = pneg %p76
        %p257 = pneg %p73
        %s258 = sand.u32 %s22, 1
        %s259 = scalar_lea.sflag [#allocation4], %s258
        %s260 = sand.u32 %s89, 1
        %s261 = smul.addr %s260, 256
        %s262 = scalar_lea.vmem [#allocation8], %s261
        %p263 = pneg %p102
        %p264 = pneg %p99
        %p265 = pneg %p130
        %p266 = pneg %p127
        %s267 = sand.u32 %s117, 1
        %s268 = scalar_lea.sflag [#allocation5], %s267
        %s269 = sand.u32 %s117, 1
        %s270 = smul.addr %s269, 128
        %s271 = scalar_lea.vmem [#allocation9], %s270
        %p272 = pneg %p156
        %p273 = pneg %p153
        %s274 = smul.u32 16, %s26
        %s275 = smul.u32 2, %s27
        %s276 = smul.u32 16, %s26
        %s277 = smul.u32 2, %s27
        %s278 = smul.u32 16, %s26
        %p279 = scmp.eq.s32.totalorder %s27, 0
        // Predicated region
        $region45: #{tpu_custom_call.1} parent=31 // pred_check
          %p280 = pneg %p279
        $region46: #{tpu_custom_call.1} parent=31 // pred_check_branch
          %282 = sbr.rel (%p280) target = $region48
        $region47: #{tpu_custom_call.1} parent=31 // pred_region
          %v283 = vld [vmem:[#allocation3] sm:$0xff]
          %v284 = vld [vmem:[#allocation3 + $0x8] sm:$0xff]
          %v285 = vld [vmem:[#allocation3 + $0x10] sm:$0xff]
          %v286 = vld [vmem:[#allocation3 + $0x18] sm:$0xff]
          %v287 = vld [vmem:[#allocation3 + $0x20] sm:$0xff]
          %v288 = vld [vmem:[#allocation3 + $0x28] sm:$0xff]
          %v289 = vld [vmem:[#allocation3 + $0x30] sm:$0xff]
          %v290 = vld [vmem:[#allocation3 + $0x38] sm:$0xff]
          %v291 = vld [vmem:[#allocation3 + $0x40] sm:$0xff]
          %v292 = vld [vmem:[#allocation3 + $0x48] sm:$0xff]
          %v293 = vld [vmem:[#allocation3 + $0x50] sm:$0xff]
          %v294 = vld [vmem:[#allocation3 + $0x58] sm:$0xff]
          %v295 = vld [vmem:[#allocation3 + $0x60] sm:$0xff]
          %v296 = vld [vmem:[#allocation3 + $0x68] sm:$0xff]
          %v297 = vld [vmem:[#allocation3 + $0x70] sm:$0xff]
          %v298 = vld [vmem:[#allocation3 + $0x78] sm:$0xff]
          %v299 = vunpack.c.l.bf16 %v283
          %v300 = vunpack.c.h.bf16 %v283
          %v301 = vunpack.c.l.bf16 %v284
          %v302 = vunpack.c.h.bf16 %v284
          %v303 = vunpack.c.l.bf16 %v285
          %v304 = vunpack.c.h.bf16 %v285
          %v305 = vunpack.c.l.bf16 %v286
          %v306 = vunpack.c.h.bf16 %v286
          %v307 = vunpack.c.l.bf16 %v287
          %v308 = vunpack.c.h.bf16 %v287
          %v309 = vunpack.c.l.bf16 %v288
          %v310 = vunpack.c.h.bf16 %v288
          %v311 = vunpack.c.l.bf16 %v289
          %v312 = vunpack.c.h.bf16 %v289
          %v313 = vunpack.c.l.bf16 %v290
          %v314 = vunpack.c.h.bf16 %v290
          %v315 = vunpack.c.l.bf16 %v291
          %v316 = vunpack.c.h.bf16 %v291
          %v317 = vunpack.c.l.bf16 %v292
          %v318 = vunpack.c.h.bf16 %v292
          %v319 = vunpack.c.l.bf16 %v293
          %v320 = vunpack.c.h.bf16 %v293
          %v321 = vunpack.c.l.bf16 %v294
          %v322 = vunpack.c.h.bf16 %v294
          %v323 = vunpack.c.l.bf16 %v295
          %v324 = vunpack.c.h.bf16 %v295
          %v325 = vunpack.c.l.bf16 %v296
          %v326 = vunpack.c.h.bf16 %v296
          %v327 = vunpack.c.l.bf16 %v297
          %v328 = vunpack.c.h.bf16 %v297
          %v329 = vunpack.c.l.bf16 %v298
          %v330 = vunpack.c.h.bf16 %v298
          %331 = vst [vmem:[#allocation10] sm:$0xff] %v283
          %332 = vst [vmem:[#allocation10 + $0x8] sm:$0xff] %v284
          %333 = vst [vmem:[#allocation10 + $0x10] sm:$0xff] %v285
          %334 = vst [vmem:[#allocation10 + $0x18] sm:$0xff] %v286
          %335 = vst [vmem:[#allocation10 + $0x20] sm:$0xff] %v287
          %336 = vst [vmem:[#allocation10 + $0x28] sm:$0xff] %v288
          %337 = vst [vmem:[#allocation10 + $0x30] sm:$0xff] %v289
          %338 = vst [vmem:[#allocation10 + $0x38] sm:$0xff] %v290
          %339 = vst [vmem:[#allocation10 + $0x40] sm:$0xff] %v291
          %340 = vst [vmem:[#allocation10 + $0x48] sm:$0xff] %v292
          %341 = vst [vmem:[#allocation10 + $0x50] sm:$0xff] %v293
          %342 = vst [vmem:[#allocation10 + $0x58] sm:$0xff] %v294
          %343 = vst [vmem:[#allocation10 + $0x60] sm:$0xff] %v295
          %344 = vst [vmem:[#allocation10 + $0x68] sm:$0xff] %v296
          %345 = vst [vmem:[#allocation10 + $0x70] sm:$0xff] %v297
          %346 = vst [vmem:[#allocation10 + $0x78] sm:$0xff] %v298
          %v347 = vmul.f32 %v299, %v299
          %v348 = vmul.f32 %v300, %v300
          %v349 = vmul.f32 %v301, %v301
          %v350 = vmul.f32 %v302, %v302
          %v351 = vmul.f32 %v303, %v303
          %v352 = vmul.f32 %v304, %v304
          %v353 = vmul.f32 %v305, %v305
          %v354 = vmul.f32 %v306, %v306
          %v355 = vmul.f32 %v307, %v307
          %v356 = vmul.f32 %v308, %v308
          %v357 = vmul.f32 %v309, %v309
          %v358 = vmul.f32 %v310, %v310
          %v359 = vmul.f32 %v311, %v311
          %v360 = vmul.f32 %v312, %v312
          %v361 = vmul.f32 %v313, %v313
          %v362 = vmul.f32 %v314, %v314
          %v363 = vmul.f32 %v315, %v315
          %v364 = vmul.f32 %v316, %v316
          %v365 = vmul.f32 %v317, %v317
          %v366 = vmul.f32 %v318, %v318
          %v367 = vmul.f32 %v319, %v319
          %v368 = vmul.f32 %v320, %v320
          %v369 = vmul.f32 %v321, %v321
          %v370 = vmul.f32 %v322, %v322
          %v371 = vmul.f32 %v323, %v323
          %v372 = vmul.f32 %v324, %v324
          %v373 = vmul.f32 %v325, %v325
          %v374 = vmul.f32 %v326, %v326
          %v375 = vmul.f32 %v327, %v327
          %v376 = vmul.f32 %v328, %v328
          %v377 = vmul.f32 %v329, %v329
          %v378 = vmul.f32 %v330, %v330
          %v379 = vadd.f32 %v347, %v348
          %380 = vadd.xlane.f32.xlu0 %v379
          %v381 = vpop.xlane.xlu0 %380
          %v382 = vadd.f32 %v349, %v350
          %383 = vadd.xlane.f32.xlu0 %v382
          %v384 = vpop.xlane.xlu0 %383
          %v385 = vadd.f32 %v351, %v352
          %386 = vadd.xlane.f32.xlu0 %v385
          %v387 = vpop.xlane.xlu0 %386
          %v388 = vadd.f32 %v353, %v354
          %389 = vadd.xlane.f32.xlu0 %v388
          %v390 = vpop.xlane.xlu0 %389
          %v391 = vadd.f32 %v355, %v356
          %392 = vadd.xlane.f32.xlu0 %v391
          %v393 = vpop.xlane.xlu0 %392
          %v394 = vadd.f32 %v357, %v358
          %395 = vadd.xlane.f32.xlu0 %v394
          %v396 = vpop.xlane.xlu0 %395
          %v397 = vadd.f32 %v359, %v360
          %398 = vadd.xlane.f32.xlu0 %v397
          %v399 = vpop.xlane.xlu0 %398
          %v400 = vadd.f32 %v361, %v362
          %401 = vadd.xlane.f32.xlu0 %v400
          %v402 = vpop.xlane.xlu0 %401
          %v403 = vadd.f32 %v363, %v364
          %404 = vadd.xlane.f32.xlu0 %v403
          %v405 = vpop.xlane.xlu0 %404
          %v406 = vadd.f32 %v365, %v366
          %407 = vadd.xlane.f32.xlu0 %v406
          %v408 = vpop.xlane.xlu0 %407
          %v409 = vadd.f32 %v367, %v368
          %410 = vadd.xlane.f32.xlu0 %v409
          %v411 = vpop.xlane.xlu0 %410
          %v412 = vadd.f32 %v369, %v370
          %413 = vadd.xlane.f32.xlu0 %v412
          %v414 = vpop.xlane.xlu0 %413
          %v415 = vadd.f32 %v371, %v372
          %416 = vadd.xlane.f32.xlu0 %v415
          %v417 = vpop.xlane.xlu0 %416
          %v418 = vadd.f32 %v373, %v374
          %419 = vadd.xlane.f32.xlu0 %v418
          %v420 = vpop.xlane.xlu0 %419
          %v421 = vadd.f32 %v375, %v376
          %422 = vadd.xlane.f32.xlu0 %v421
          %v423 = vpop.xlane.xlu0 %422
          %v424 = vadd.f32 %v377, %v378
          %425 = vadd.xlane.f32.xlu0 %v424
          %v426 = vpop.xlane.xlu0 %425
          %v427 = vrcp.pop 256.0
          %v428 = vmul.f32 256.0, %v427
          %v429 = vsub.f32 1.0, %v428
          %v430 = vmul.f32 %v427, %v429
          %v431 = vadd.f32 %v427, %v430
          %vm432 = vweird.f32 %v427
          %v433 = vsel %vm432, %v427, %v431
          %v434 = vmul.f32 %v381, %v433
          %v435 = vmul.f32 %v384, %v433
          %v436 = vmul.f32 %v387, %v433
          %v437 = vmul.f32 %v390, %v433
          %v438 = vmul.f32 %v393, %v433
          %v439 = vmul.f32 %v396, %v433
          %v440 = vmul.f32 %v399, %v433
          %v441 = vmul.f32 %v402, %v433
          %v442 = vmul.f32 %v405, %v433
          %v443 = vmul.f32 %v408, %v433
          %v444 = vmul.f32 %v411, %v433
          %v445 = vmul.f32 %v414, %v433
          %v446 = vmul.f32 %v417, %v433
          %v447 = vmul.f32 %v420, %v433
          %v448 = vmul.f32 %v423, %v433
          %v449 = vmul.f32 %v426, %v433
          %v450 = vadd.f32 %v434, 1e-06
          %v451 = vadd.f32 %v435, 1e-06
          %v452 = vadd.f32 %v436, 1e-06
          %v453 = vadd.f32 %v437, 1e-06
          %v454 = vadd.f32 %v438, 1e-06
          %v455 = vadd.f32 %v439, 1e-06
          %v456 = vadd.f32 %v440, 1e-06
          %v457 = vadd.f32 %v441, 1e-06
          %v458 = vadd.f32 %v442, 1e-06
          %v459 = vadd.f32 %v443, 1e-06
          %v460 = vadd.f32 %v444, 1e-06
          %v461 = vadd.f32 %v445, 1e-06
          %v462 = vadd.f32 %v446, 1e-06
          %v463 = vadd.f32 %v447, 1e-06
          %v464 = vadd.f32 %v448, 1e-06
          %v465 = vadd.f32 %v449, 1e-06
          %v466 = vrsqrt.pop %v450
          %v467 = vmul.f32 %v466, %v450
          %v468 = vmul.f32 %v467, %v466
          %v469 = vmul.f32 0.5, %v468
          %v470 = vsub.f32 1.5, %v469
          %v471 = vmul.f32 %v466, %v470
          %vm472 = vweird.f32 %v450
          %vm473 = vweird.f32 %v466
          %vm474 = vmor %vm472, %vm473
          %v475 = vsel %vm474, %v466, %v471
          %v476 = vrsqrt.pop %v451
          %v477 = vmul.f32 %v476, %v451
          %v478 = vmul.f32 %v477, %v476
          %v479 = vmul.f32 0.5, %v478
          %v480 = vsub.f32 1.5, %v479
          %v481 = vmul.f32 %v476, %v480
          %vm482 = vweird.f32 %v451
          %vm483 = vweird.f32 %v476
          %vm484 = vmor %vm482, %vm483
          %v485 = vsel %vm484, %v476, %v481
          %v486 = vrsqrt.pop %v452
          %v487 = vmul.f32 %v486, %v452
          %v488 = vmul.f32 %v487, %v486
          %v489 = vmul.f32 0.5, %v488
          %v490 = vsub.f32 1.5, %v489
          %v491 = vmul.f32 %v486, %v490
          %vm492 = vweird.f32 %v452
          %vm493 = vweird.f32 %v486
          %vm494 = vmor %vm492, %vm493
          %v495 = vsel %vm494, %v486, %v491
          %v496 = vrsqrt.pop %v453
          %v497 = vmul.f32 %v496, %v453
          %v498 = vmul.f32 %v497, %v496
          %v499 = vmul.f32 0.5, %v498
          %v500 = vsub.f32 1.5, %v499
          %v501 = vmul.f32 %v496, %v500
          %vm502 = vweird.f32 %v453
          %vm503 = vweird.f32 %v496
          %vm504 = vmor %vm502, %vm503
          %v505 = vsel %vm504, %v496, %v501
          %v506 = vrsqrt.pop %v454
          %v507 = vmul.f32 %v506, %v454
          %v508 = vmul.f32 %v507, %v506
          %v509 = vmul.f32 0.5, %v508
          %v510 = vsub.f32 1.5, %v509
          %v511 = vmul.f32 %v506, %v510
          %vm512 = vweird.f32 %v454
          %vm513 = vweird.f32 %v506
          %vm514 = vmor %vm512, %vm513
          %v515 = vsel %vm514, %v506, %v511
          %v516 = vrsqrt.pop %v455
          %v517 = vmul.f32 %v516, %v455
          %v518 = vmul.f32 %v517, %v516
          %v519 = vmul.f32 0.5, %v518
          %v520 = vsub.f32 1.5, %v519
          %v521 = vmul.f32 %v516, %v520
          %vm522 = vweird.f32 %v455
          %vm523 = vweird.f32 %v516
          %vm524 = vmor %vm522, %vm523
          %v525 = vsel %vm524, %v516, %v521
          %v526 = vrsqrt.pop %v456
          %v527 = vmul.f32 %v526, %v456
          %v528 = vmul.f32 %v527, %v526
          %v529 = vmul.f32 0.5, %v528
          %v530 = vsub.f32 1.5, %v529
          %v531 = vmul.f32 %v526, %v530
          %vm532 = vweird.f32 %v456
          %vm533 = vweird.f32 %v526
          %vm534 = vmor %vm532, %vm533
          %v535 = vsel %vm534, %v526, %v531
          %v536 = vrsqrt.pop %v457
          %v537 = vmul.f32 %v536, %v457
          %v538 = vmul.f32 %v537, %v536
          %v539 = vmul.f32 0.5, %v538
          %v540 = vsub.f32 1.5, %v539
          %v541 = vmul.f32 %v536, %v540
          %vm542 = vweird.f32 %v457
          %vm543 = vweird.f32 %v536
          %vm544 = vmor %vm542, %vm543
          %v545 = vsel %vm544, %v536, %v541
          %v546 = vrsqrt.pop %v458
          %v547 = vmul.f32 %v546, %v458
          %v548 = vmul.f32 %v547, %v546
          %v549 = vmul.f32 0.5, %v548
          %v550 = vsub.f32 1.5, %v549
          %v551 = vmul.f32 %v546, %v550
          %vm552 = vweird.f32 %v458
          %vm553 = vweird.f32 %v546
          %vm554 = vmor %vm552, %vm553
          %v555 = vsel %vm554, %v546, %v551
          %v556 = vrsqrt.pop %v459
          %v557 = vmul.f32 %v556, %v459
          %v558 = vmul.f32 %v557, %v556
          %v559 = vmul.f32 0.5, %v558
          %v560 = vsub.f32 1.5, %v559
          %v561 = vmul.f32 %v556, %v560
          %vm562 = vweird.f32 %v459
          %vm563 = vweird.f32 %v556
          %vm564 = vmor %vm562, %vm563
          %v565 = vsel %vm564, %v556, %v561
          %v566 = vrsqrt.pop %v460
          %v567 = vmul.f32 %v566, %v460
          %v568 = vmul.f32 %v567, %v566
          %v569 = vmul.f32 0.5, %v568
          %v570 = vsub.f32 1.5, %v569
          %v571 = vmul.f32 %v566, %v570
          %vm572 = vweird.f32 %v460
          %vm573 = vweird.f32 %v566
          %vm574 = vmor %vm572, %vm573
          %v575 = vsel %vm574, %v566, %v571
          %v576 = vrsqrt.pop %v461
          %v577 = vmul.f32 %v576, %v461
          %v578 = vmul.f32 %v577, %v576
          %v579 = vmul.f32 0.5, %v578
          %v580 = vsub.f32 1.5, %v579
          %v581 = vmul.f32 %v576, %v580
          %vm582 = vweird.f32 %v461
          %vm583 = vweird.f32 %v576
          %vm584 = vmor %vm582, %vm583
          %v585 = vsel %vm584, %v576, %v581
          %v586 = vrsqrt.pop %v462
          %v587 = vmul.f32 %v586, %v462
          %v588 = vmul.f32 %v587, %v586
          %v589 = vmul.f32 0.5, %v588
          %v590 = vsub.f32 1.5, %v589
          %v591 = vmul.f32 %v586, %v590
          %vm592 = vweird.f32 %v462
          %vm593 = vweird.f32 %v586
          %vm594 = vmor %vm592, %vm593
          %v595 = vsel %vm594, %v586, %v591
          %v596 = vrsqrt.pop %v463
          %v597 = vmul.f32 %v596, %v463
          %v598 = vmul.f32 %v597, %v596
          %v599 = vmul.f32 0.5, %v598
          %v600 = vsub.f32 1.5, %v599
          %v601 = vmul.f32 %v596, %v600
          %vm602 = vweird.f32 %v463
          %vm603 = vweird.f32 %v596
          %vm604 = vmor %vm602, %vm603
          %v605 = vsel %vm604, %v596, %v601
          %v606 = vrsqrt.pop %v464
          %v607 = vmul.f32 %v606, %v464
          %v608 = vmul.f32 %v607, %v606
          %v609 = vmul.f32 0.5, %v608
          %v610 = vsub.f32 1.5, %v609
          %v611 = vmul.f32 %v606, %v610
          %vm612 = vweird.f32 %v464
          %vm613 = vweird.f32 %v606
          %vm614 = vmor %vm612, %vm613
          %v615 = vsel %vm614, %v606, %v611
          %v616 = vrsqrt.pop %v465
          %v617 = vmul.f32 %v616, %v465
          %v618 = vmul.f32 %v617, %v616
          %v619 = vmul.f32 0.5, %v618
          %v620 = vsub.f32 1.5, %v619
          %v621 = vmul.f32 %v616, %v620
          %vm622 = vweird.f32 %v465
          %vm623 = vweird.f32 %v616
          %vm624 = vmor %vm622, %vm623
          %v625 = vsel %vm624, %v616, %v621
          %v626 = vmul.f32 %v299, %v475
          %v627 = vmul.f32 %v300, %v475
          %v628 = vmul.f32 %v301, %v485
          %v629 = vmul.f32 %v302, %v485
          %v630 = vmul.f32 %v303, %v495
          %v631 = vmul.f32 %v304, %v495
          %v632 = vmul.f32 %v305, %v505
          %v633 = vmul.f32 %v306, %v505
          %v634 = vmul.f32 %v307, %v515
          %v635 = vmul.f32 %v308, %v515
          %v636 = vmul.f32 %v309, %v525
          %v637 = vmul.f32 %v310, %v525
          %v638 = vmul.f32 %v311, %v535
          %v639 = vmul.f32 %v312, %v535
          %v640 = vmul.f32 %v313, %v545
          %v641 = vmul.f32 %v314, %v545
          %v642 = vmul.f32 %v315, %v555
          %v643 = vmul.f32 %v316, %v555
          %v644 = vmul.f32 %v317, %v565
          %v645 = vmul.f32 %v318, %v565
          %v646 = vmul.f32 %v319, %v575
          %v647 = vmul.f32 %v320, %v575
          %v648 = vmul.f32 %v321, %v585
          %v649 = vmul.f32 %v322, %v585
          %v650 = vmul.f32 %v323, %v595
          %v651 = vmul.f32 %v324, %v595
          %v652 = vmul.f32 %v325, %v605
          %v653 = vmul.f32 %v326, %v605
          %v654 = vmul.f32 %v327, %v615
          %v655 = vmul.f32 %v328, %v615
          %v656 = vmul.f32 %v329, %v625
          %v657 = vmul.f32 %v330, %v625
          %v658 = vld [vmem:[#allocation6] sm:$0x3]
          %v659 = vunpack.c.l.bf16 %v658
          %v661 = vperm.slane %v659, 0
          %v662 = vperm.slane %v659, 2
          %v665 = vperm.slane %v661, 0
          %v666 = vperm.slane %v662, 0
          %v667 = vmul.f32 %v626, %v665
          %v668 = vmul.f32 %v627, %v666
          %v669 = vmul.f32 %v628, %v665
          %v670 = vmul.f32 %v629, %v666
          %v671 = vmul.f32 %v630, %v665
          %v672 = vmul.f32 %v631, %v666
          %v673 = vmul.f32 %v632, %v665
          %v674 = vmul.f32 %v633, %v666
          %v675 = vmul.f32 %v634, %v665
          %v676 = vmul.f32 %v635, %v666
          %v677 = vmul.f32 %v636, %v665
          %v678 = vmul.f32 %v637, %v666
          %v679 = vmul.f32 %v638, %v665
          %v680 = vmul.f32 %v639, %v666
          %v681 = vmul.f32 %v640, %v665
          %v682 = vmul.f32 %v641, %v666
          %v683 = vmul.f32 %v642, %v665
          %v684 = vmul.f32 %v643, %v666
          %v685 = vmul.f32 %v644, %v665
          %v686 = vmul.f32 %v645, %v666
          %v687 = vmul.f32 %v646, %v665
          %v688 = vmul.f32 %v647, %v666
          %v689 = vmul.f32 %v648, %v665
          %v690 = vmul.f32 %v649, %v666
          %v691 = vmul.f32 %v650, %v665
          %v692 = vmul.f32 %v651, %v666
          %v693 = vmul.f32 %v652, %v665
          %v694 = vmul.f32 %v653, %v666
          %v695 = vmul.f32 %v654, %v665
          %v696 = vmul.f32 %v655, %v666
          %v697 = vmul.f32 %v656, %v665
          %v698 = vmul.f32 %v657, %v666
          %v699 = vpack.c.bf16 %v668, %v667
          %v700 = vpack.c.bf16 %v670, %v669
          %v701 = vpack.c.bf16 %v672, %v671
          %v702 = vpack.c.bf16 %v674, %v673
          %v703 = vpack.c.bf16 %v676, %v675
          %v704 = vpack.c.bf16 %v678, %v677
          %v705 = vpack.c.bf16 %v680, %v679
          %v706 = vpack.c.bf16 %v682, %v681
          %v707 = vpack.c.bf16 %v684, %v683
          %v708 = vpack.c.bf16 %v686, %v685
          %v709 = vpack.c.bf16 %v688, %v687
          %v710 = vpack.c.bf16 %v690, %v689
          %v711 = vpack.c.bf16 %v692, %v691
          %v712 = vpack.c.bf16 %v694, %v693
          %v713 = vpack.c.bf16 %v696, %v695
          %v714 = vpack.c.bf16 %v698, %v697
          %715 = vst [vmem:[#allocation2] sm:$0xff] %v699
          %716 = vst [vmem:[#allocation2 + $0x8] sm:$0xff] %v700
          %717 = vst [vmem:[#allocation2 + $0x10] sm:$0xff] %v701
          %718 = vst [vmem:[#allocation2 + $0x18] sm:$0xff] %v702
          %719 = vst [vmem:[#allocation2 + $0x20] sm:$0xff] %v703
          %720 = vst [vmem:[#allocation2 + $0x28] sm:$0xff] %v704
          %721 = vst [vmem:[#allocation2 + $0x30] sm:$0xff] %v705
          %722 = vst [vmem:[#allocation2 + $0x38] sm:$0xff] %v706
          %723 = vst [vmem:[#allocation2 + $0x40] sm:$0xff] %v707
          %724 = vst [vmem:[#allocation2 + $0x48] sm:$0xff] %v708
          %725 = vst [vmem:[#allocation2 + $0x50] sm:$0xff] %v709
          %726 = vst [vmem:[#allocation2 + $0x58] sm:$0xff] %v710
          %727 = vst [vmem:[#allocation2 + $0x60] sm:$0xff] %v711
          %728 = vst [vmem:[#allocation2 + $0x68] sm:$0xff] %v712
          %729 = vst [vmem:[#allocation2 + $0x70] sm:$0xff] %v713
          %730 = vst [vmem:[#allocation2 + $0x78] sm:$0xff] %v714
        $region48: #{tpu_custom_call.1} parent=31 // pred_fallthru
          _
        %v731 = vld [vmem:[#allocation2] sm:$0xff]
        %v732 = vld [vmem:[#allocation2 + $0x8] sm:$0xff]
        %v733 = vld [vmem:[#allocation2 + $0x10] sm:$0xff]
        %v734 = vld [vmem:[#allocation2 + $0x18] sm:$0xff]
        %v735 = vld [vmem:[#allocation2 + $0x20] sm:$0xff]
        %v736 = vld [vmem:[#allocation2 + $0x28] sm:$0xff]
        %v737 = vld [vmem:[#allocation2 + $0x30] sm:$0xff]
        %v738 = vld [vmem:[#allocation2 + $0x38] sm:$0xff]
        %v739 = vld [vmem:[#allocation2 + $0x40] sm:$0xff]
        %v740 = vld [vmem:[#allocation2 + $0x48] sm:$0xff]
        %v741 = vld [vmem:[#allocation2 + $0x50] sm:$0xff]
        %v742 = vld [vmem:[#allocation2 + $0x58] sm:$0xff]
        %v743 = vld [vmem:[#allocation2 + $0x60] sm:$0xff]
        %v744 = vld [vmem:[#allocation2 + $0x68] sm:$0xff]
        %v745 = vld [vmem:[#allocation2 + $0x70] sm:$0xff]
        %v746 = vld [vmem:[#allocation2 + $0x78] sm:$0xff]
        %v747 = vld [vmem:[%s248] sm:$0xff]
        %v748 = vld [vmem:[%s248 + $0x8] sm:$0xff]
        %v749 = vld [vmem:[%s248 + $0x10] sm:$0xff]
        %v750 = vld [vmem:[%s248 + $0x18] sm:$0xff]
        %v751 = vld [vmem:[%s248 + $0x20] sm:$0xff]
        %v752 = vld [vmem:[%s248 + $0x28] sm:$0xff]
        %v753 = vld [vmem:[%s248 + $0x30] sm:$0xff]
        %v754 = vld [vmem:[%s248 + $0x38] sm:$0xff]
        %v755 = vld [vmem:[%s248 + $0x40] sm:$0xff]
        %v756 = vld [vmem:[%s248 + $0x48] sm:$0xff]
        %v757 = vld [vmem:[%s248 + $0x50] sm:$0xff]
        %v758 = vld [vmem:[%s248 + $0x58] sm:$0xff]
        %v759 = vld [vmem:[%s248 + $0x60] sm:$0xff]
        %v760 = vld [vmem:[%s248 + $0x68] sm:$0xff]
        %v761 = vld [vmem:[%s248 + $0x70] sm:$0xff]
        %v762 = vld [vmem:[%s248 + $0x78] sm:$0xff]
        %v763 = vld [vmem:[%s248 + $0x80] sm:$0xff]
        %v764 = vld [vmem:[%s248 + $0x88] sm:$0xff]
        %v765 = vld [vmem:[%s248 + $0x90] sm:$0xff]
        %v766 = vld [vmem:[%s248 + $0x98] sm:$0xff]
        %v767 = vld [vmem:[%s248 + $0xa0] sm:$0xff]
        %v768 = vld [vmem:[%s248 + $0xa8] sm:$0xff]
        %v769 = vld [vmem:[%s248 + $0xb0] sm:$0xff]
        %v770 = vld [vmem:[%s248 + $0xb8] sm:$0xff]
        %v771 = vld [vmem:[%s248 + $0xc0] sm:$0xff]
        %v772 = vld [vmem:[%s248 + $0xc8] sm:$0xff]
        %v773 = vld [vmem:[%s248 + $0xd0] sm:$0xff]
        %v774 = vld [vmem:[%s248 + $0xd8] sm:$0xff]
        %v775 = vld [vmem:[%s248 + $0xe0] sm:$0xff]
        %v776 = vld [vmem:[%s248 + $0xe8] sm:$0xff]
        %v777 = vld [vmem:[%s248 + $0xf0] sm:$0xff]
        %v778 = vld [vmem:[%s248 + $0xf8] sm:$0xff]
        %v795 = vunpack.c.l.b16 %v731
        %v796 = vunpack.c.h.b16 %v731
        %v797 = vunpack.c.l.b16 %v732
        %v798 = vunpack.c.h.b16 %v732
        %v799 = vunpack.c.l.b16 %v733
        %v800 = vunpack.c.h.b16 %v733
        %v801 = vunpack.c.l.b16 %v734
        %v802 = vunpack.c.h.b16 %v734
        %v803 = vunpack.c.l.b16 %v735
        %v804 = vunpack.c.h.b16 %v735
        %v805 = vunpack.c.l.b16 %v736
        %v806 = vunpack.c.h.b16 %v736
        %v807 = vunpack.c.l.b16 %v737
        %v808 = vunpack.c.h.b16 %v737
        %v809 = vunpack.c.l.b16 %v738
        %v810 = vunpack.c.h.b16 %v738
        %v811 = vunpack.c.l.b16 %v739
        %v812 = vunpack.c.h.b16 %v739
        %v813 = vunpack.c.l.b16 %v740
        %v814 = vunpack.c.h.b16 %v740
        %v815 = vunpack.c.l.b16 %v741
        %v816 = vunpack.c.h.b16 %v741
        %v817 = vunpack.c.l.b16 %v742
        %v818 = vunpack.c.h.b16 %v742
        %v819 = vunpack.c.l.b16 %v743
        %v820 = vunpack.c.h.b16 %v743
        %v821 = vunpack.c.l.b16 %v744
        %v822 = vunpack.c.h.b16 %v744
        %v823 = vunpack.c.l.b16 %v745
        %v824 = vunpack.c.h.b16 %v745
        %v825 = vunpack.c.l.b16 %v746
        %v826 = vunpack.c.h.b16 %v746
        %v827 = vpack.c.b16 %v797, %v795
        %v828 = vpack.c.b16 %v798, %v796
        %v829 = vpack.c.b16 %v801, %v799
        %v830 = vpack.c.b16 %v802, %v800
        %v831 = vpack.c.b16 %v805, %v803
        %v832 = vpack.c.b16 %v806, %v804
        %v833 = vpack.c.b16 %v809, %v807
        %v834 = vpack.c.b16 %v810, %v808
        %v835 = vpack.c.b16 %v813, %v811
        %v836 = vpack.c.b16 %v814, %v812
        %v837 = vpack.c.b16 %v817, %v815
        %v838 = vpack.c.b16 %v818, %v816
        %v839 = vpack.c.b16 %v821, %v819
        %v840 = vpack.c.b16 %v822, %v820
        %v841 = vpack.c.b16 %v825, %v823
        %v842 = vpack.c.b16 %v826, %v824
        %v891 = vunpack.c.l.b16 %v747
        %v892 = vunpack.c.h.b16 %v747
        %v893 = vunpack.c.l.b16 %v748
        %v894 = vunpack.c.h.b16 %v748
        %v895 = vunpack.c.l.b16 %v749
        %v896 = vunpack.c.h.b16 %v749
        %v897 = vunpack.c.l.b16 %v750
        %v898 = vunpack.c.h.b16 %v750
        %v899 = vunpack.c.l.b16 %v751
        %v900 = vunpack.c.h.b16 %v751
        %v901 = vunpack.c.l.b16 %v752
        %v902 = vunpack.c.h.b16 %v752
        %v903 = vunpack.c.l.b16 %v753
        %v904 = vunpack.c.h.b16 %v753
        %v905 = vunpack.c.l.b16 %v754
        %v906 = vunpack.c.h.b16 %v754
        %v907 = vunpack.c.l.b16 %v755
        %v908 = vunpack.c.h.b16 %v755
        %v909 = vunpack.c.l.b16 %v756
        %v910 = vunpack.c.h.b16 %v756
        %v911 = vunpack.c.l.b16 %v757
        %v912 = vunpack.c.h.b16 %v757
        %v913 = vunpack.c.l.b16 %v758
        %v914 = vunpack.c.h.b16 %v758
        %v915 = vunpack.c.l.b16 %v759
        %v916 = vunpack.c.h.b16 %v759
        %v917 = vunpack.c.l.b16 %v760
        %v918 = vunpack.c.h.b16 %v760
        %v919 = vunpack.c.l.b16 %v761
        %v920 = vunpack.c.h.b16 %v761
        %v921 = vunpack.c.l.b16 %v762
        %v922 = vunpack.c.h.b16 %v762
        %v923 = vunpack.c.l.b16 %v763
        %v924 = vunpack.c.h.b16 %v763
        %v925 = vunpack.c.l.b16 %v764
        %v926 = vunpack.c.h.b16 %v764
        %v927 = vunpack.c.l.b16 %v765
        %v928 = vunpack.c.h.b16 %v765
        %v929 = vunpack.c.l.b16 %v766
        %v930 = vunpack.c.h.b16 %v766
        %v931 = vunpack.c.l.b16 %v767
        %v932 = vunpack.c.h.b16 %v767
        %v933 = vunpack.c.l.b16 %v768
        %v934 = vunpack.c.h.b16 %v768
        %v935 = vunpack.c.l.b16 %v769
        %v936 = vunpack.c.h.b16 %v769
        %v937 = vunpack.c.l.b16 %v770
        %v938 = vunpack.c.h.b16 %v770
        %v939 = vunpack.c.l.b16 %v771
        %v940 = vunpack.c.h.b16 %v771
        %v941 = vunpack.c.l.b16 %v772
        %v942 = vunpack.c.h.b16 %v772
        %v943 = vunpack.c.l.b16 %v773
        %v944 = vunpack.c.h.b16 %v773
        %v945 = vunpack.c.l.b16 %v774
        %v946 = vunpack.c.h.b16 %v774
        %v947 = vunpack.c.l.b16 %v775
        %v948 = vunpack.c.h.b16 %v775
        %v949 = vunpack.c.l.b16 %v776
        %v950 = vunpack.c.h.b16 %v776
        %v951 = vunpack.c.l.b16 %v777
        %v952 = vunpack.c.h.b16 %v777
        %v953 = vunpack.c.l.b16 %v778
        %v954 = vunpack.c.h.b16 %v778
        %v955 = vpack.c.b16 %v893, %v891
        %v956 = vpack.c.b16 %v894, %v892
        %v957 = vpack.c.b16 %v897, %v895
        %v958 = vpack.c.b16 %v898, %v896
        %v959 = vpack.c.b16 %v901, %v899
        %v960 = vpack.c.b16 %v902, %v900
        %v961 = vpack.c.b16 %v905, %v903
        %v962 = vpack.c.b16 %v906, %v904
        %v963 = vpack.c.b16 %v909, %v907
        %v964 = vpack.c.b16 %v910, %v908
        %v965 = vpack.c.b16 %v913, %v911
        %v966 = vpack.c.b16 %v914, %v912
        %v967 = vpack.c.b16 %v917, %v915
        %v968 = vpack.c.b16 %v918, %v916
        %v969 = vpack.c.b16 %v921, %v919
        %v970 = vpack.c.b16 %v922, %v920
        %v971 = vpack.c.b16 %v925, %v923
        %v972 = vpack.c.b16 %v926, %v924
        %v973 = vpack.c.b16 %v929, %v927
        %v974 = vpack.c.b16 %v930, %v928
        %v975 = vpack.c.b16 %v933, %v931
        %v976 = vpack.c.b16 %v934, %v932
        %v977 = vpack.c.b16 %v937, %v935
        %v978 = vpack.c.b16 %v938, %v936
        %v979 = vpack.c.b16 %v941, %v939
        %v980 = vpack.c.b16 %v942, %v940
        %v981 = vpack.c.b16 %v945, %v943
        %v982 = vpack.c.b16 %v946, %v944
        %v983 = vpack.c.b16 %v949, %v947
        %v984 = vpack.c.b16 %v950, %v948
        %v985 = vpack.c.b16 %v953, %v951
        %v986 = vpack.c.b16 %v954, %v952
        %1019 = vmatpush.bf16.msra.mxu0 %v969
        %1020 = vmatpush.bf16.msra.mxu0 %v967
        %1021 = vmatpush.bf16.msra.mxu0 %v965
        %1022 = vmatpush.bf16.msra.mxu0 %v963
        %1023 = vmatpush.bf16.msra.mxu0 %v961
        %1024 = vmatpush.bf16.msra.mxu0 %v959
        %1025 = vmatpush.bf16.msra.mxu0 %v957
        %1026 = vmatpush.bf16.msra.mxu0 %v955
        %1027 = vmatmul.bf16.gmra.mxu0 %v827
        %v1028 = vpop.f32.mrf.mxu0
        %v1029 = vadd.f32 0.0, %v1028
        %v1030 = vpop.f32.mrf.mxu0
        %v1031 = vadd.f32 0.0, %v1030
        %1032 = vmatmul.bf16.gmra.mxu0 %v829
        %v1033 = vpop.f32.mrf.mxu0
        %v1034 = vadd.f32 0.0, %v1033
        %v1035 = vpop.f32.mrf.mxu0
        %v1036 = vadd.f32 0.0, %v1035
        %1037 = vmatmul.bf16.gmra.mxu0 %v831
        %v1038 = vpop.f32.mrf.mxu0
        %v1039 = vadd.f32 0.0, %v1038
        %v1040 = vpop.f32.mrf.mxu0
        %v1041 = vadd.f32 0.0, %v1040
        %1042 = vmatmul.bf16.gmra.mxu0 %v833
        %v1043 = vpop.f32.mrf.mxu0
        %v1044 = vadd.f32 0.0, %v1043
        %v1045 = vpop.f32.mrf.mxu0
        %v1046 = vadd.f32 0.0, %v1045
        %1047 = vmatmul.bf16.gmra.mxu0 %v835
        %v1048 = vpop.f32.mrf.mxu0
        %v1049 = vadd.f32 0.0, %v1048
        %v1050 = vpop.f32.mrf.mxu0
        %v1051 = vadd.f32 0.0, %v1050
        %1052 = vmatmul.bf16.gmra.mxu0 %v837
        %v1053 = vpop.f32.mrf.mxu0
        %v1054 = vadd.f32 0.0, %v1053
        %v1055 = vpop.f32.mrf.mxu0
        %v1056 = vadd.f32 0.0, %v1055
        %1057 = vmatmul.bf16.gmra.mxu0 %v839
        %v1058 = vpop.f32.mrf.mxu0
        %v1059 = vadd.f32 0.0, %v1058
        %v1060 = vpop.f32.mrf.mxu0
        %v1061 = vadd.f32 0.0, %v1060
        %1062 = vmatmul.bf16.gmra.mxu0 %v841
        %v1063 = vpop.f32.mrf.mxu0
        %v1064 = vadd.f32 0.0, %v1063
        %v1065 = vpop.f32.mrf.mxu0
        %v1066 = vadd.f32 0.0, %v1065
        %1067 = vdwg.mxu0
        %1068 = vmatpush.bf16.msra.mxu0 %v985
        %1069 = vmatpush.bf16.msra.mxu0 %v983
        %1070 = vmatpush.bf16.msra.mxu0 %v981
        %1071 = vmatpush.bf16.msra.mxu0 %v979
        %1072 = vmatpush.bf16.msra.mxu0 %v977
        %1073 = vmatpush.bf16.msra.mxu0 %v975
        %1074 = vmatpush.bf16.msra.mxu0 %v973
        %1075 = vmatpush.bf16.msra.mxu0 %v971
        %1076 = vmatmul.bf16.gmra.mxu0 %v828
        %v1077 = vpop.f32.mrf.mxu0
        %v1078 = vadd.f32 %v1029, %v1077
        %v1079 = vpop.f32.mrf.mxu0
        %v1080 = vadd.f32 %v1031, %v1079
        %1081 = vmatmul.bf16.gmra.mxu0 %v830
        %v1082 = vpop.f32.mrf.mxu0
        %v1083 = vadd.f32 %v1034, %v1082
        %v1084 = vpop.f32.mrf.mxu0
        %v1085 = vadd.f32 %v1036, %v1084
        %1086 = vmatmul.bf16.gmra.mxu0 %v832
        %v1087 = vpop.f32.mrf.mxu0
        %v1088 = vadd.f32 %v1039, %v1087
        %v1089 = vpop.f32.mrf.mxu0
        %v1090 = vadd.f32 %v1041, %v1089
        %1091 = vmatmul.bf16.gmra.mxu0 %v834
        %v1092 = vpop.f32.mrf.mxu0
        %v1093 = vadd.f32 %v1044, %v1092
        %v1094 = vpop.f32.mrf.mxu0
        %v1095 = vadd.f32 %v1046, %v1094
        %1096 = vmatmul.bf16.gmra.mxu0 %v836
        %v1097 = vpop.f32.mrf.mxu0
        %v1098 = vadd.f32 %v1049, %v1097
        %v1099 = vpop.f32.mrf.mxu0
        %v1100 = vadd.f32 %v1051, %v1099
        %1101 = vmatmul.bf16.gmra.mxu0 %v838
        %v1102 = vpop.f32.mrf.mxu0
        %v1103 = vadd.f32 %v1054, %v1102
        %v1104 = vpop.f32.mrf.mxu0
        %v1105 = vadd.f32 %v1056, %v1104
        %1106 = vmatmul.bf16.gmra.mxu0 %v840
        %v1107 = vpop.f32.mrf.mxu0
        %v1108 = vadd.f32 %v1059, %v1107
        %v1109 = vpop.f32.mrf.mxu0
        %v1110 = vadd.f32 %v1061, %v1109
        %1111 = vmatmul.bf16.gmra.mxu0 %v842
        %v1112 = vpop.f32.mrf.mxu0
        %v1113 = vadd.f32 %v1064, %v1112
        %v1114 = vpop.f32.mrf.mxu0
        %v1115 = vadd.f32 %v1066, %v1114
        %1116 = vdwg.mxu0
        %1117 = vmatpush.bf16.msra.mxu0 %v970
        %1118 = vmatpush.bf16.msra.mxu0 %v968
        %1119 = vmatpush.bf16.msra.mxu0 %v966
        %1120 = vmatpush.bf16.msra.mxu0 %v964
        %1121 = vmatpush.bf16.msra.mxu0 %v962
        %1122 = vmatpush.bf16.msra.mxu0 %v960
        %1123 = vmatpush.bf16.msra.mxu0 %v958
        %1124 = vmatpush.bf16.msra.mxu0 %v956
        %1125 = vmatmul.bf16.gmra.mxu0 %v827
        %v1126 = vpop.f32.mrf.mxu0
        %v1127 = vadd.f32 0.0, %v1126
        %v1128 = vpop.f32.mrf.mxu0
        %v1129 = vadd.f32 0.0, %v1128
        %1130 = vmatmul.bf16.gmra.mxu0 %v829
        %v1131 = vpop.f32.mrf.mxu0
        %v1132 = vadd.f32 0.0, %v1131
        %v1133 = vpop.f32.mrf.mxu0
        %v1134 = vadd.f32 0.0, %v1133
        %1135 = vmatmul.bf16.gmra.mxu0 %v831
        %v1136 = vpop.f32.mrf.mxu0
        %v1137 = vadd.f32 0.0, %v1136
        %v1138 = vpop.f32.mrf.mxu0
        %v1139 = vadd.f32 0.0, %v1138
        %1140 = vmatmul.bf16.gmra.mxu0 %v833
        %v1141 = vpop.f32.mrf.mxu0
        %v1142 = vadd.f32 0.0, %v1141
        %v1143 = vpop.f32.mrf.mxu0
        %v1144 = vadd.f32 0.0, %v1143
        %1145 = vmatmul.bf16.gmra.mxu0 %v835
        %v1146 = vpop.f32.mrf.mxu0
        %v1147 = vadd.f32 0.0, %v1146
        %v1148 = vpop.f32.mrf.mxu0
        %v1149 = vadd.f32 0.0, %v1148
        %1150 = vmatmul.bf16.gmra.mxu0 %v837
        %v1151 = vpop.f32.mrf.mxu0
        %v1152 = vadd.f32 0.0, %v1151
        %v1153 = vpop.f32.mrf.mxu0
        %v1154 = vadd.f32 0.0, %v1153
        %1155 = vmatmul.bf16.gmra.mxu0 %v839
        %v1156 = vpop.f32.mrf.mxu0
        %v1157 = vadd.f32 0.0, %v1156
        %v1158 = vpop.f32.mrf.mxu0
        %v1159 = vadd.f32 0.0, %v1158
        %1160 = vmatmul.bf16.gmra.mxu0 %v841
        %v1161 = vpop.f32.mrf.mxu0
        %v1162 = vadd.f32 0.0, %v1161
        %v1163 = vpop.f32.mrf.mxu0
        %v1164 = vadd.f32 0.0, %v1163
        %1165 = vdwg.mxu0
        %1166 = vmatpush.bf16.msra.mxu0 %v986
        %1167 = vmatpush.bf16.msra.mxu0 %v984
        %1168 = vmatpush.bf16.msra.mxu0 %v982
        %1169 = vmatpush.bf16.msra.mxu0 %v980
        %1170 = vmatpush.bf16.msra.mxu0 %v978
        %1171 = vmatpush.bf16.msra.mxu0 %v976
        %1172 = vmatpush.bf16.msra.mxu0 %v974
        %1173 = vmatpush.bf16.msra.mxu0 %v972
        %1174 = vmatmul.bf16.gmra.mxu0 %v828
        %v1175 = vpop.f32.mrf.mxu0
        %v1176 = vadd.f32 %v1127, %v1175
        %v1177 = vpop.f32.mrf.mxu0
        %v1178 = vadd.f32 %v1129, %v1177
        %1179 = vmatmul.bf16.gmra.mxu0 %v830
        %v1180 = vpop.f32.mrf.mxu0
        %v1181 = vadd.f32 %v1132, %v1180
        %v1182 = vpop.f32.mrf.mxu0
        %v1183 = vadd.f32 %v1134, %v1182
        %1184 = vmatmul.bf16.gmra.mxu0 %v832
        %v1185 = vpop.f32.mrf.mxu0
        %v1186 = vadd.f32 %v1137, %v1185
        %v1187 = vpop.f32.mrf.mxu0
        %v1188 = vadd.f32 %v1139, %v1187
        %1189 = vmatmul.bf16.gmra.mxu0 %v834
        %v1190 = vpop.f32.mrf.mxu0
        %v1191 = vadd.f32 %v1142, %v1190
        %v1192 = vpop.f32.mrf.mxu0
        %v1193 = vadd.f32 %v1144, %v1192
        %1194 = vmatmul.bf16.gmra.mxu0 %v836
        %v1195 = vpop.f32.mrf.mxu0
        %v1196 = vadd.f32 %v1147, %v1195
        %v1197 = vpop.f32.mrf.mxu0
        %v1198 = vadd.f32 %v1149, %v1197
        %1199 = vmatmul.bf16.gmra.mxu0 %v838
        %v1200 = vpop.f32.mrf.mxu0
        %v1201 = vadd.f32 %v1152, %v1200
        %v1202 = vpop.f32.mrf.mxu0
        %v1203 = vadd.f32 %v1154, %v1202
        %1204 = vmatmul.bf16.gmra.mxu0 %v840
        %v1205 = vpop.f32.mrf.mxu0
        %v1206 = vadd.f32 %v1157, %v1205
        %v1207 = vpop.f32.mrf.mxu0
        %v1208 = vadd.f32 %v1159, %v1207
        %1209 = vmatmul.bf16.gmra.mxu0 %v842
        %v1210 = vpop.f32.mrf.mxu0
        %v1211 = vadd.f32 %v1162, %v1210
        %v1212 = vpop.f32.mrf.mxu0
        %v1213 = vadd.f32 %v1164, %v1212
        %1214 = vdwg.mxu0
        %v1215 = vpack.c.bf16 %v1176, %v1078
        %v1216 = vpack.c.bf16 %v1178, %v1080
        %v1217 = vpack.c.bf16 %v1181, %v1083
        %v1218 = vpack.c.bf16 %v1183, %v1085
        %v1219 = vpack.c.bf16 %v1186, %v1088
        %v1220 = vpack.c.bf16 %v1188, %v1090
        %v1221 = vpack.c.bf16 %v1191, %v1093
        %v1222 = vpack.c.bf16 %v1193, %v1095
        %v1223 = vpack.c.bf16 %v1196, %v1098
        %v1224 = vpack.c.bf16 %v1198, %v1100
        %v1225 = vpack.c.bf16 %v1201, %v1103
        %v1226 = vpack.c.bf16 %v1203, %v1105
        %v1227 = vpack.c.bf16 %v1206, %v1108
        %v1228 = vpack.c.bf16 %v1208, %v1110
        %v1229 = vpack.c.bf16 %v1211, %v1113
        %v1230 = vpack.c.bf16 %v1213, %v1115
        %1231 = vst [vmem:[%s271] sm:$0xff] %v1215
        %1232 = vst [vmem:[%s271 + $0x8] sm:$0xff] %v1216
        %1233 = vst [vmem:[%s271 + $0x10] sm:$0xff] %v1217
        %1234 = vst [vmem:[%s271 + $0x18] sm:$0xff] %v1218
        %1235 = vst [vmem:[%s271 + $0x20] sm:$0xff] %v1219
        %1236 = vst [vmem:[%s271 + $0x28] sm:$0xff] %v1220
        %1237 = vst [vmem:[%s271 + $0x30] sm:$0xff] %v1221
        %1238 = vst [vmem:[%s271 + $0x38] sm:$0xff] %v1222
        %1239 = vst [vmem:[%s271 + $0x40] sm:$0xff] %v1223
        %1240 = vst [vmem:[%s271 + $0x48] sm:$0xff] %v1224
        %1241 = vst [vmem:[%s271 + $0x50] sm:$0xff] %v1225
        %1242 = vst [vmem:[%s271 + $0x58] sm:$0xff] %v1226
        %1243 = vst [vmem:[%s271 + $0x60] sm:$0xff] %v1227
        %1244 = vst [vmem:[%s271 + $0x68] sm:$0xff] %v1228
        %1245 = vst [vmem:[%s271 + $0x70] sm:$0xff] %v1229
        %1246 = vst [vmem:[%s271 + $0x78] sm:$0xff] %v1230
        %s1247 = sand.u32 %s117, 1
        %s1248 = scalar_lea.sflag [#allocation5], %s1247
        %s1249 = sand.u32 %s117, 1
        %s1250 = smul.addr %s1249, 128
        %s1251 = scalar_lea.vmem [#allocation9], %s1250
        // Predicated region
        $region49: #{tpu_custom_call.1} parent=31 // pred_check
          %p1252 = pneg %p127
        $region50: #{tpu_custom_call.1} parent=31 // pred_check_branch
          %1254 = sbr.rel (%p1252) target = $region52
        $region51: #{tpu_custom_call.1} parent=31 // pred_region
          %s1255 = smul.u32 16, %s26
          %s1256 = smul.u32 2, %s27
          %1258 = vsyncadd %s1248, 0
          %s1259 = smul.addr %s1255, 4
          %s1260 = sadd.s32 %s1256, %s1259
          %s1261 = smul.addr %s1260, 4
          %s1262 = scalar_lea.hbm %s3, %s1261
          %s1263 = sshll.u32 %s1251, 4
          %s1264 = int_to_ptr.vmem [resolvable:$true] %s1263
          %s1265 = sshll.u32 %s1262, 4
          %s1266 = int_to_ptr.hbm [resolvable:$true] %s1265
          %1271 = dma.vmem_to_hbm [thread:$0]  %s1264, 2048, %s1266, %s1248, 128, 256, 8
        $region52: #{tpu_custom_call.1} parent=31 // pred_fallthru
          _
        // Predicated region
        $region53: #{tpu_custom_call.1} parent=31 // pred_check
          %p1272 = pneg %p153
        $region54: #{tpu_custom_call.1} parent=31 // pred_check_branch
          %1274 = sbr.rel (%p1272) target = $region56
        $region55: #{tpu_custom_call.1} parent=31 // pred_region
          %s1275 = smul.u32 16, %s26
          %1277 = vsyncadd [#allocation11], 0
          %s1278 = smul.addr %s1275, 2
          %s1279 = smul.addr %s1278, 4
          %s1280 = scalar_lea.hbm %s4, %s1279
          %s1281 = sshll.u32 [#allocation10], 4
          %s1282 = int_to_ptr.vmem [resolvable:$true] %s1281
          %s1283 = sshll.u32 %s1280, 4
          %s1284 = int_to_ptr.hbm [resolvable:$true] %s1283
          %1289 = dma.vmem_to_hbm [thread:$0]  %s1282, 2048, %s1284, [#allocation11], 128, 128, 8
        $region56: #{tpu_custom_call.1} parent=31 // pred_fallthru
          _
        // Predicated region
        $region57: #{tpu_custom_call.1} parent=31 // pred_check
          %p1290 = pneg %p153
        $region58: #{tpu_custom_call.1} parent=31 // pred_check_branch
          %1292 = sbr.rel (%p1290) target = $region60
        $region59: #{tpu_custom_call.1} parent=31 // pred_region
          %1294 = dma.done [#allocation11], 2048
        $region60: #{tpu_custom_call.1} parent=31 // pred_fallthru
          _
      $region32: #{tpu_custom_call.1} parent=5 // pred_fallthru
        _
      %p1295 = scmp.le.s32.totalorder 2, %s17
      // Predicated region
      $region61: #{tpu_custom_call.1} parent=5 // pred_check
        %p1296 = pneg %p1295
      $region62: #{tpu_custom_call.1} parent=5 // pred_check_branch
        %1298 = sbr.rel (%p1296) target = $region64
      $region63: #{tpu_custom_call.1} parent=5 // pred_region
        %s1299 = ssub.s32 %s17, 2
        // Predicated region
        $region65: #{tpu_custom_call.1} parent=63 // pred_check
          %p1300 = pneg %p133
        $region66: #{tpu_custom_call.1} parent=63 // pred_check_branch
          %1302 = sbr.rel (%p1300) target = $region68
        $region67: #{tpu_custom_call.1} parent=63 // pred_region
          %s1303 = sand.u32 %s118, 1
          %s1304 = scalar_lea.sflag [#allocation5], %s1303
          %s1305 = sand.u32 %s118, 1
          %s1306 = smul.addr %s1305, 128
          %s1307 = scalar_lea.vmem [#allocation9], %s1306
          %1309 = dma.done %s1304, 2048
        $region68: #{tpu_custom_call.1} parent=63 // pred_fallthru
          _
      $region64: #{tpu_custom_call.1} parent=5 // pred_fallthru
        _
    $region6: #{tpu_custom_call.1} parent=1 // loop_footer
      %s21 = sadd.s32 1, %s17
    $region7: #{tpu_custom_call.1} parent=1 // loop_footer_branch
      %16 = sbr.rel target = $region3
    $region8: #{tpu_custom_call.1} parent=1 // loop_exit
      _
    %1310 = vsyncpa [#allocation4], 1
    %s1311 = scalar_lea.sflag [#allocation4], 1
    %1312 = vsyncpa %s1311, 1
    %1313 = vsyncpa [#allocation7], 1
    %1314 = vsyncpa [#allocation5], 1
    %s1315 = scalar_lea.sflag [#allocation5], 1
    %1316 = vsyncpa %s1315, 1
    %1317 = vsyncpa [#allocation11], 1

</llo_original>
